<compile_context>
chip_gen: v7x
topology: tpu7x:2x2x1
jax: 0.10.0
libtpu: 0.0.40
codegen_flags: <defaults>
</compile_context>

<pallas_src>
import functools
import math

import jax
import jax.numpy as jnp
from jax import lax
from jax.experimental import pallas as pl
from jax.experimental.pallas import tpu as pltpu

EPS = 1e-6
NEG_INF = -1e9

# Storage dtype for weights and q/k/v/attention intermediates: halves HBM traffic and resident
# VMEM and is MXU-native on v5e/v6e/v7x. Accumulation stays f32 (preferred_element_type);
# LayerNorm / softmax / residual stream stay f32.
MXU_DTYPE = jnp.bfloat16


# ----------------------------------------------------------------------------
# Small helpers
# ----------------------------------------------------------------------------
def _layernorm(x, a, b):
    # torch.Tensor.std is unbiased (ddof=1); the reference LayerNorm divides by (std + eps).
    d = x.shape[-1]
    mean = jnp.mean(x, axis=-1, keepdims=True)
    diff = x - mean
    var = jnp.sum(diff * diff, axis=-1, keepdims=True) / (d - 1)
    return a * diff / (jnp.sqrt(var) + EPS) + b


def _row_tile(m, bytes_per_row, budget=16 << 20):
    """Row tile for M = B*S grids: multiple of 16 (bf16 sublane packing), double-buffered row
    blocks under `budget`, preferring >= 2 grid steps (pipelining / v7x megacore)."""
    if m < 16:
        return m
    fits = [t for t in (2048, 1024, 512, 256, 128, 64, 32, 16)
            if m % t == 0 and 2 * t * bytes_per_row <= budget]
    for t in fits:
        if m // t >= 2:
            return t
    return fits[0] if fits else m


def _seq_tile(sq, skv, d, budget=12 << 20):
    """Sq tile for the attention grid: bounds the (tq, Skv) f32 score matrix plus the
    q/res/out row blocks (key for v7x's 64 MiB VMEM)."""
    if sq < 16:
        return sq
    fits = [t for t in (1024, 512, 256, 128, 64, 32, 16)
            if sq % t == 0 and 2 * (t * skv * 4 + t * d * (2 + 4 + 4)) <= budget]
    for t in fits:
        if sq // t >= 2:
            return t
    return fits[0] if fits else sq


def _block_bytes(*blocks):
    """Approximate VMEM footprint of a pallas_call (every block double-buffered)."""
    total = 0
    for shape, dtype in blocks:
        n = 1
        for s in shape:
            n *= int(s)
        total += n * jnp.dtype(dtype).itemsize
    return 2 * total


def _cparams(block_bytes, semantics):
    """Raise the scoped-VMEM limit when the estimated footprint exceeds the smallest default
    (v5e: 16 MiB); capped at 64 MiB so the same value is valid on v7x."""
    need = block_bytes + (2 << 20)  # headroom for Mosaic internal scratch
    limit = int(min(need, 64 << 20)) if need > (16 << 20) else None
    return pltpu.CompilerParams(dimension_semantics=semantics, vmem_limit_bytes=limit)


# ----------------------------------------------------------------------------
# Kernels
# ----------------------------------------------------------------------------
def ln_qkv_kernel(x_ref, a_ref, b_ref, w_ref, bias_ref, q_ref, k_ref, v_ref):
    """Fused LayerNorm + packed (D, 3D) QKV projection, split into 3 lane-dense bf16 outputs."""
    xn = _layernorm(x_ref[...], a_ref[...], b_ref[...])
    qkv = jnp.dot(xn.astype(w_ref.dtype), w_ref[...],
                  preferred_element_type=jnp.float32) + bias_ref[...]
    d = q_ref.shape[-1]
    q_ref[...] = qkv[:, :d].astype(q_ref.dtype)
    k_ref[...] = qkv[:, d:2 * d].astype(k_ref.dtype)
    v_ref[...] = qkv[:, 2 * d:].astype(v_ref.dtype)


def ln_linear_kernel(x_ref, a_ref, b_ref, w_ref, bias_ref, o_ref):
    """Fused LayerNorm + linear projection (bf16 output)."""
    xn = _layernorm(x_ref[...], a_ref[...], b_ref[...])
    o_ref[...] = (jnp.dot(xn.astype(w_ref.dtype), w_ref[...],
                          preferred_element_type=jnp.float32)
                  + bias_ref[...]).astype(o_ref.dtype)


def kv_kernel(m_ref, w_ref, bias_ref, k_ref, v_ref):
    """Packed (D, 2D) K/V projection of the encoder memory (no LayerNorm in the reference)."""
    kv = jnp.dot(m_ref[...].astype(w_ref.dtype), w_ref[...],
                 preferred_element_type=jnp.float32) + bias_ref[...]
    d = k_ref.shape[-1]
    k_ref[...] = kv[:, :d].astype(k_ref.dtype)
    v_ref[...] = kv[:, d:].astype(v_ref.dtype)


def attn_outproj_kernel(q_ref, k_ref, v_ref, mask_ref, wo_ref, bo_ref, res_ref, o_ref,
                        *, num_heads, sm_scale):
    """All heads of one (batch, Sq-tile) per grid step, with the output projection, bias and
    residual add fused in (residual buffer aliased to the output)."""
    q = q_ref[0]                     # (tq,  D)  bf16
    k = k_ref[0]                     # (Skv, D)  bf16
    v = v_ref[0]                     # (Skv, D)  bf16
    keep = mask_ref[...] > 0         # hoisted out of the head loop (computed once, reused H times)
    d = q.shape[-1]
    dk = d // num_heads
    heads = []
    # TODO(synk): for production dk < 128, emit q/k/v head-major and grid over (b, h) to avoid
    # sub-lane slices / the lane concatenate and to feed the full MXU width.
    for h in range(num_heads):       # static unroll over heads
        lo = h * dk
        qh = q[:, lo:lo + dk]
        kh = k[:, lo:lo + dk]
        vh = v[:, lo:lo + dk]
        # Contract the last axis of q and k: no explicit k.T / XLU transpose.
        s = lax.dot_general(qh, kh, (((1,), (1,)), ((), ())),
                            preferred_element_type=jnp.float32) * sm_scale
        s = jnp.where(keep, s, NEG_INF)
        s = s - jnp.max(s, axis=-1, keepdims=True)
        p = jnp.exp(s)
        p = p * pl.reciprocal(jnp.sum(p, axis=-1, keepdims=True), approx=True)
        heads.append(jnp.dot(p.astype(v.dtype), vh, preferred_element_type=jnp.float32))
    attn = jnp.concatenate(heads, axis=-1)          # lane-dense (tq, D) f32
    # Fused output projection + bias + residual.
    o_ref[0] = (res_ref[0]
                + jnp.dot(attn.astype(wo_ref.dtype), wo_ref[...],
                          preferred_element_type=jnp.float32)
                + bo_ref[...])


def ln_ffn_residual_kernel(x_ref, a_ref, b_ref, w1_ref, b1_ref, w2_ref, b2_ref, o_ref):
    """Fused LayerNorm + FFN (relu) + residual; x is read once for both LN and residual."""
    x = x_ref[...]
    xn = _layernorm(x, a_ref[...], b_ref[...])
    h = jnp.dot(xn.astype(w1_ref.dtype), w1_ref[...],
                preferred_element_type=jnp.float32) + b1_ref[...]
    h = jnp.maximum(h, 0.0)
    # TODO(synk): for very large d_ff on v7x (64 MiB VMEM), chunk d_ff with an f32 accumulator
    # and stream w1/w2 per chunk instead of keeping them fully resident.
    o_ref[...] = x + jnp.dot(h.astype(w2_ref.dtype), w2_ref[...],
                             preferred_element_type=jnp.float32) + b2_ref[...]


# ----------------------------------------------------------------------------
# Wrappers around pallas_call
# ----------------------------------------------------------------------------
def ln_qkv(x2d, a, b, w_qkv, b_qkv):
    m, d = x2d.shape
    tm = _row_tile(m, bytes_per_row=4 * d + 3 * 2 * d)
    out = jax.ShapeDtypeStruct((m, d), MXU_DTYPE)
    cp = _cparams(
        _block_bytes(((tm, d), jnp.float32), ((1, d), jnp.float32), ((1, d), jnp.float32),
                     ((d, 3 * d), MXU_DTYPE), ((1, 3 * d), jnp.float32),
                     ((tm, d), MXU_DTYPE), ((tm, d), MXU_DTYPE), ((tm, d), MXU_DTYPE),
                     ((tm, 3 * d), jnp.float32)),     # in-kernel qkv intermediate
        ("parallel",))
    return pl.pallas_call(
        ln_qkv_kernel,
        out_shape=(out, out, out),
        grid=(m // tm,),
        in_specs=[
            pl.BlockSpec((tm, d), lambda i: (i, 0)),
            pl.BlockSpec((1, d), lambda i: (0, 0)),
            pl.BlockSpec((1, d), lambda i: (0, 0)),
            pl.BlockSpec((d, 3 * d), lambda i: (0, 0)),
            pl.BlockSpec((1, 3 * d), lambda i: (0, 0)),
        ],
        out_specs=(
            pl.BlockSpec((tm, d), lambda i: (i, 0)),
            pl.BlockSpec((tm, d), lambda i: (i, 0)),
            pl.BlockSpec((tm, d), lambda i: (i, 0)),
        ),
        compiler_params=cp,
    )(x2d, a.reshape(1, d), b.reshape(1, d), w_qkv, b_qkv.reshape(1, 3 * d))


def ln_linear(x2d, a, b, w, bias):
    m, d = x2d.shape
    n = w.shape[1]
    tm = _row_tile(m, bytes_per_row=4 * d + 2 * n)
    cp = _cparams(
        _block_bytes(((tm, d), jnp.float32), ((1, d), jnp.float32), ((1, d), jnp.float32),
                     ((d, n), MXU_DTYPE), ((1, n), jnp.float32), ((tm, n), MXU_DTYPE)),
        ("parallel",))
    return pl.pallas_call(
        ln_linear_kernel,
        out_shape=jax.ShapeDtypeStruct((m, n), MXU_DTYPE),
        grid=(m // tm,),
        in_specs=[
            pl.BlockSpec((tm, d), lambda i: (i, 0)),
            pl.BlockSpec((1, d), lambda i: (0, 0)),
            pl.BlockSpec((1, d), lambda i: (0, 0)),
            pl.BlockSpec((d, n), lambda i: (0, 0)),
            pl.BlockSpec((1, n), lambda i: (0, 0)),
        ],
        out_specs=pl.BlockSpec((tm, n), lambda i: (i, 0)),
        compiler_params=cp,
    )(x2d, a.reshape(1, d), b.reshape(1, d), w, bias.reshape(1, n))


def kv_proj(m2d, w_kv, b_kv):
    mm, d = m2d.shape
    tm = _row_tile(mm, bytes_per_row=4 * d + 2 * 2 * d)
    out = jax.ShapeDtypeStruct((mm, d), MXU_DTYPE)
    cp = _cparams(
        _block_bytes(((tm, d), jnp.float32), ((d, 2 * d), MXU_DTYPE),
                     ((1, 2 * d), jnp.float32), ((tm, d), MXU_DTYPE), ((tm, d), MXU_DTYPE)),
        ("parallel",))
    return pl.pallas_call(
        kv_kernel,
        out_shape=(out, out),
        grid=(mm // tm,),
        in_specs=[
            pl.BlockSpec((tm, d), lambda i: (i, 0)),
            pl.BlockSpec((d, 2 * d), lambda i: (0, 0)),
            pl.BlockSpec((1, 2 * d), lambda i: (0, 0)),
        ],
        out_specs=(
            pl.BlockSpec((tm, d), lambda i: (i, 0)),
            pl.BlockSpec((tm, d), lambda i: (i, 0)),
        ),
        compiler_params=cp,
    )(m2d, w_kv, b_kv.reshape(1, 2 * d))


def attention_outproj(q, k, v, mask, wo, bo, res, num_heads):
    """Multi-head attention with fused output projection + bias + residual.
    Grid = (batch, Sq-tiles); k/v/wo/bo/mask blocks stay resident across Sq tiles."""
    b, sq, d = q.shape
    skv = k.shape[1]
    dk = d // num_heads
    tq = _seq_tile(sq, skv, d)
    kern = functools.partial(attn_outproj_kernel, num_heads=num_heads,
                             sm_scale=1.0 / math.sqrt(dk))
    cp = _cparams(
        _block_bytes(((1, tq, d), MXU_DTYPE), ((1, skv, d), MXU_DTYPE),
                     ((1, skv, d), MXU_DTYPE), ((tq, skv), jnp.float32),
                     ((d, d), MXU_DTYPE), ((1, d), jnp.float32),
                     ((1, tq, d), jnp.float32), ((1, tq, d), jnp.float32),
                     ((tq, skv), jnp.float32)),       # in-kernel score/exp intermediate
        ("parallel", "parallel"))
    return pl.pallas_call(
        kern,
        out_shape=jax.ShapeDtypeStruct((b, sq, d), jnp.float32),
        grid=(b, sq // tq),
        in_specs=[
            pl.BlockSpec((1, tq, d), lambda i, j: (i, j, 0)),
            pl.BlockSpec((1, skv, d), lambda i, j: (i, 0, 0)),
            pl.BlockSpec((1, skv, d), lambda i, j: (i, 0, 0)),
            pl.BlockSpec((tq, skv), lambda i, j: (j, 0)),
            pl.BlockSpec((d, d), lambda i, j: (0, 0)),
            pl.BlockSpec((1, d), lambda i, j: (0, 0)),
            pl.BlockSpec((1, tq, d), lambda i, j: (i, j, 0)),
        ],
        out_specs=pl.BlockSpec((1, tq, d), lambda i, j: (i, j, 0)),
        input_output_aliases={6: 0},   # residual buffer reused for the output
        compiler_params=cp,
    )(q, k, v, mask, wo, bo.reshape(1, d), res)


def ln_ffn_residual(x2d, a, b, w1, b1, w2, b2):
    m, d = x2d.shape
    dff = w1.shape[1]
    tm = _row_tile(m, bytes_per_row=8 * d + 4 * dff)
    cp = _cparams(
        _block_bytes(((tm, d), jnp.float32), ((1, d), jnp.float32), ((1, d), jnp.float32),
                     ((d, dff), MXU_DTYPE), ((1, dff), jnp.float32),
                     ((dff, d), MXU_DTYPE), ((1, d), jnp.float32),
                     ((tm, d), jnp.float32), ((tm, dff), jnp.float32)),  # h intermediate
        ("parallel",))
    return pl.pallas_call(
        ln_ffn_residual_kernel,
        out_shape=jax.ShapeDtypeStruct((m, d), jnp.float32),
        grid=(m // tm,),
        in_specs=[
            pl.BlockSpec((tm, d), lambda i: (i, 0)),
            pl.BlockSpec((1, d), lambda i: (0, 0)),
            pl.BlockSpec((1, d), lambda i: (0, 0)),
            pl.BlockSpec((d, dff), lambda i: (0, 0)),
            pl.BlockSpec((1, dff), lambda i: (0, 0)),
            pl.BlockSpec((dff, d), lambda i: (0, 0)),
            pl.BlockSpec((1, d), lambda i: (0, 0)),
        ],
        out_specs=pl.BlockSpec((tm, d), lambda i: (i, 0)),
        input_output_aliases={0: 0},   # x (residual) buffer reused for the output
        compiler_params=cp,
    )(x2d, a.reshape(1, d), b.reshape(1, d),
      w1, b1.reshape(1, dff), w2, b2.reshape(1, d))


# ----------------------------------------------------------------------------
# Decoder layer forward
# ----------------------------------------------------------------------------
def decoder_layer(x, memory, src_mask, tgt_mask, params, num_heads):
    b, s, d = x.shape
    s_src = memory.shape[1]

    # Sublayer 0: x = x + self_attn(LN(x), LN(x), LN(x), tgt_mask)   (dropout == identity)
    sa = params["self_attn"]
    q2d, k2d, v2d = ln_qkv(x.reshape(b * s, d), params["ln0_a"], params["ln0_b"],
                           sa["w_qkv"], sa["b_qkv"])
    # NOTE: in production, donate x at the jit boundary (donate_argnums=0) so this first
    # residual alias is copy-free; without donation XLA inserts one defensive copy of x.
    x = attention_outproj(q2d.reshape(b, s, d), k2d.reshape(b, s, d), v2d.reshape(b, s, d),
                          tgt_mask, sa["wo"], sa["bo"], x, num_heads)

    # Sublayer 1: x = x + src_attn(LN(x), memory, memory, src_mask)
    ca = params["src_attn"]
    q2d = ln_linear(x.reshape(b * s, d), params["ln1_a"], params["ln1_b"], ca["wq"], ca["bq"])
    k2d, v2d = kv_proj(memory.reshape(b * s_src, d), ca["w_kv"], ca["b_kv"])
    x = attention_outproj(q2d.reshape(b, s, d), k2d.reshape(b, s_src, d),
                          v2d.reshape(b, s_src, d), src_mask, ca["wo"], ca["bo"], x, num_heads)

    # Sublayer 2: x = x + ffn(LN(x))
    ff = params["ffn"]
    x2d = ln_ffn_residual(x.reshape(b * s, d), params["ln2_a"], params["ln2_b"],
                          ff["w1"], ff["b1"], ff["w2"], ff["b2"])
    return x2d.reshape(b, s, d)


# ----------------------------------------------------------------------------
# Deterministic parameter init (synthetic, no checkpoint loading)
# ----------------------------------------------------------------------------
def _lin_init(key, fan_in, fan_out, scale=0.05):
    kw, kb = jax.random.split(key)
    w = scale * jax.random.normal(kw, (fan_in, fan_out), jnp.float32)
    bias = scale * jax.random.normal(kb, (fan_out,), jnp.float32)
    return w.astype(MXU_DTYPE), bias   # weights stored bf16; biases stay f32


def _self_attn_init(key, d_model):
    k1, k2, k3, k4 = jax.random.split(key, 4)
    wq, bq = _lin_init(k1, d_model, d_model)
    wk, bk = _lin_init(k2, d_model, d_model)
    wv, bv = _lin_init(k3, d_model, d_model)
    wo, bo = _lin_init(k4, d_model, d_model)
    return dict(w_qkv=jnp.concatenate([wq, wk, wv], axis=1),
                b_qkv=jnp.concatenate([bq, bk, bv]),
                wo=wo, bo=bo)


def _src_attn_init(key, d_model):
    k1, k2, k3, k4 = jax.random.split(key, 4)
    wq, bq = _lin_init(k1, d_model, d_model)
    wk, bk = _lin_init(k2, d_model, d_model)
    wv, bv = _lin_init(k3, d_model, d_model)
    wo, bo = _lin_init(k4, d_model, d_model)
    return dict(wq=wq, bq=bq,
                w_kv=jnp.concatenate([wk, wv], axis=1),
                b_kv=jnp.concatenate([bk, bv]),
                wo=wo, bo=bo)


def init_params(key, d_model, d_ff):
    k_self, k_src, k_ff1, k_ff2 = jax.random.split(key, 4)
    w1, b1 = _lin_init(k_ff1, d_model, d_ff)
    w2, b2 = _lin_init(k_ff2, d_ff, d_model)
    return {
        "ln0_a": jnp.ones((d_model,), jnp.float32),
        "ln0_b": jnp.zeros((d_model,), jnp.float32),
        "ln1_a": jnp.ones((d_model,), jnp.float32),
        "ln1_b": jnp.zeros((d_model,), jnp.float32),
        "ln2_a": jnp.ones((d_model,), jnp.float32),
        "ln2_b": jnp.zeros((d_model,), jnp.float32),
        "self_attn": _self_attn_init(k_self, d_model),
        "src_attn": _src_attn_init(k_src, d_model),
        "ffn": dict(w1=w1, b1=b1, w2=w2, b2=b2),
    }


if __name__ == "__main__":
    # Toy shapes only; tile/VMEM decisions are sized for production dims (D multiple of 128).
    B, S_TGT, S_SRC, D_MODEL, N_HEADS, D_FF = 2, 8, 8, 32, 4, 64

    key = jax.random.PRNGKey(0)
    kx, km, kp = jax.random.split(key, 3)
    x = jax.random.normal(kx, (B, S_TGT, D_MODEL), jnp.float32)
    memory = jax.random.normal(km, (B, S_SRC, D_MODEL), jnp.float32)
    params = init_params(kp, D_MODEL, D_FF)

    # Masks shared across batch/heads (1 = attend, 0 = masked with -1e9).
    # TODO(synk): per-batch padding masks would need a (B, Sq, Skv) mask + batched BlockSpec.
    tgt_mask = jnp.tril(jnp.ones((S_TGT, S_TGT), jnp.float32))  # causal
    src_mask = jnp.ones((S_TGT, S_SRC), jnp.float32)            # full cross-attn

    fwd = jax.jit(functools.partial(decoder_layer, num_heads=N_HEADS))
    out = jax.block_until_ready(fwd(x, memory, src_mask, tgt_mask, params))
    assert out.shape == (B, S_TGT, D_MODEL)
    assert bool(jnp.all(jnp.isfinite(out)))
    print("KERNEL_OK")
</pallas_src>

<mosaic_0001>
module attributes {stable_mosaic.version = 11 : i64} {
  func.func @ln_qkv_kernel(%arg0: i32, %arg1: memref<16x32xf32, #tpu.memory_space<vmem>>, %arg2: memref<1x32xf32, #tpu.memory_space<vmem>>, %arg3: memref<1x32xf32, #tpu.memory_space<vmem>>, %arg4: memref<32x96xbf16, #tpu.memory_space<vmem>>, %arg5: memref<1x96xf32, #tpu.memory_space<vmem>>, %arg6: memref<16x32xbf16, #tpu.memory_space<vmem>>, %arg7: memref<16x32xbf16, #tpu.memory_space<vmem>>, %arg8: memref<16x32xbf16, #tpu.memory_space<vmem>>) attributes {dimension_semantics = [#tpu.dimension_semantics<parallel>], iteration_bounds = array<i64: 1>, scalar_prefetch = 0 : i64, scratch_operands = 0 : i64, tpu.core_type = #tpu.core_type<tc>, window_params = [{transform_indices = @transform_0, window_bounds = array<i64: 16, 32>}, {pipeline_mode = #tpu.pipeline_mode<synchronous>, transform_indices = @transform_1, window_bounds = array<i64: 1, 32>}, {pipeline_mode = #tpu.pipeline_mode<synchronous>, transform_indices = @transform_2, window_bounds = array<i64: 1, 32>}, {pipeline_mode = #tpu.pipeline_mode<synchronous>, transform_indices = @transform_3, window_bounds = array<i64: 32, 96>}, {pipeline_mode = #tpu.pipeline_mode<synchronous>, transform_indices = @transform_4, window_bounds = array<i64: 1, 96>}, {transform_indices = @transform_5, window_bounds = array<i64: 16, 32>}, {transform_indices = @transform_6, window_bounds = array<i64: 16, 32>}, {transform_indices = @transform_7, window_bounds = array<i64: 16, 32>}]} {
    %c0 = arith.constant 0 : index
    %c0_0 = arith.constant 0 : index
    %0 = vector.load %arg1[%c0, %c0_0] : memref<16x32xf32, #tpu.memory_space<vmem>>, vector<16x32xf32>
    %c0_1 = arith.constant 0 : index
    %c0_2 = arith.constant 0 : index
    %1 = vector.load %arg2[%c0_1, %c0_2] : memref<1x32xf32, #tpu.memory_space<vmem>>, vector<1x32xf32>
    %c0_3 = arith.constant 0 : index
    %c0_4 = arith.constant 0 : index
    %2 = vector.load %arg3[%c0_3, %c0_4] : memref<1x32xf32, #tpu.memory_space<vmem>>, vector<1x32xf32>
    %cst = arith.constant dense<0.000000e+00> : vector<16xf32>
    %3 = vector.multi_reduction <add>, %0, %cst [1] : vector<16x32xf32> to vector<16xf32>
    %4 = vector.shape_cast %3 : vector<16xf32> to vector<16x1xf32>
    %cst_5 = arith.constant 3.200000e+01 : f32
    %5 = vector.broadcast %cst_5 : f32 to vector<16x1xf32>
    %6 = arith.divf %4, %5 : vector<16x1xf32>
    %7 = vector.broadcast %6 : vector<16x1xf32> to vector<16x32xf32>
    %8 = arith.subf %0, %7 : vector<16x32xf32>
    %9 = arith.mulf %8, %8 : vector<16x32xf32>
    %cst_6 = arith.constant dense<0.000000e+00> : vector<16xf32>
    %10 = vector.multi_reduction <add>, %9, %cst_6 [1] : vector<16x32xf32> to vector<16xf32>
    %11 = vector.shape_cast %10 : vector<16xf32> to vector<16x1xf32>
    %cst_7 = arith.constant 3.100000e+01 : f32
    %12 = vector.broadcast %cst_7 : f32 to vector<16x1xf32>
    %13 = arith.divf %11, %12 : vector<16x1xf32>
    %14 = vector.broadcast %1 : vector<1x32xf32> to vector<16x32xf32>
    %15 = arith.mulf %14, %8 : vector<16x32xf32>
    %16 = math.sqrt %13 : vector<16x1xf32>
    %cst_8 = arith.constant 9.99999997E-7 : f32
    %17 = vector.broadcast %cst_8 : f32 to vector<16x1xf32>
    %18 = arith.addf %16, %17 : vector<16x1xf32>
    %19 = vector.broadcast %18 : vector<16x1xf32> to vector<16x32xf32>
    %20 = arith.divf %15, %19 : vector<16x32xf32>
    %21 = vector.broadcast %2 : vector<1x32xf32> to vector<16x32xf32>
    %22 = arith.addf %20, %21 : vector<16x32xf32>
    %23 = arith.truncf %22 : vector<16x32xf32> to vector<16x32xbf16>
    %c0_9 = arith.constant 0 : index
    %c0_10 = arith.constant 0 : index
    %24 = vector.load %arg4[%c0_9, %c0_10] : memref<32x96xbf16, #tpu.memory_space<vmem>>, vector<32x96xbf16>
    %cst_11 = arith.constant dense<0.000000e+00> : vector<16x96xf32>
    %25 = tpu.matmul %23, %24, %cst_11 {dimension_numbers = #tpu.dot_dimension_numbers<[1], [0], [0], [1], [0, 0, 1, 1], [], []>} : vector<16x32xbf16>, vector<32x96xbf16>, vector<16x96xf32> -> vector<16x96xf32>
    %c0_12 = arith.constant 0 : index
    %c0_13 = arith.constant 0 : index
    %26 = vector.load %arg5[%c0_12, %c0_13] : memref<1x96xf32, #tpu.memory_space<vmem>>, vector<1x96xf32>
    %27 = vector.broadcast %26 : vector<1x96xf32> to vector<16x96xf32>
    %28 = arith.addf %25, %27 : vector<16x96xf32>
    %29 = vector.extract_strided_slice %28 {offsets = [0, 0], sizes = [16, 32], strides = [1, 1]} : vector<16x96xf32> to vector<16x32xf32>
    %30 = arith.truncf %29 : vector<16x32xf32> to vector<16x32xbf16>
    %c0_14 = arith.constant 0 : index
    %c0_15 = arith.constant 0 : index
    %31 = vector.load %arg6[%c0_14, %c0_15] : memref<16x32xbf16, #tpu.memory_space<vmem>>, vector<16x32xbf16>
    tpu.vector_store %arg6[%c0_14, %c0_15], %30 {strides = array<i32>} : memref<16x32xbf16, #tpu.memory_space<vmem>>, vector<16x32xbf16>,
    %32 = vector.extract_strided_slice %28 {offsets = [0, 32], sizes = [16, 32], strides = [1, 1]} : vector<16x96xf32> to vector<16x32xf32>
    %33 = arith.truncf %32 : vector<16x32xf32> to vector<16x32xbf16>
    %c0_16 = arith.constant 0 : index
    %c0_17 = arith.constant 0 : index
    %34 = vector.load %arg7[%c0_16, %c0_17] : memref<16x32xbf16, #tpu.memory_space<vmem>>, vector<16x32xbf16>
    tpu.vector_store %arg7[%c0_16, %c0_17], %33 {strides = array<i32>} : memref<16x32xbf16, #tpu.memory_space<vmem>>, vector<16x32xbf16>,
    %35 = vector.extract_strided_slice %28 {offsets = [0, 64], sizes = [16, 32], strides = [1, 1]} : vector<16x96xf32> to vector<16x32xf32>
    %36 = arith.truncf %35 : vector<16x32xf32> to vector<16x32xbf16>
    %c0_18 = arith.constant 0 : index
    %c0_19 = arith.constant 0 : index
    %37 = vector.load %arg8[%c0_18, %c0_19] : memref<16x32xbf16, #tpu.memory_space<vmem>>, vector<16x32xbf16>
    tpu.vector_store %arg8[%c0_18, %c0_19], %36 {strides = array<i32>} : memref<16x32xbf16, #tpu.memory_space<vmem>>, vector<16x32xbf16>,
    return
  }
  func.func @transform_0(%arg0: i32) -> (i32, i32) {
    %c0_i32 = arith.constant 0 : i32
    %c0_i32_0 = arith.constant 0 : i32
    return %arg0, %c0_i32 : i32, i32
  }
  func.func @transform_1(%arg0: i32) -> (i32, i32) {
    %c0_i32 = arith.constant 0 : i32
    %c0_i32_0 = arith.constant 0 : i32
    %c0_i32_1 = arith.constant 0 : i32
    return %c0_i32, %c0_i32_0 : i32, i32
  }
  func.func @transform_2(%arg0: i32) -> (i32, i32) {
    %c0_i32 = arith.constant 0 : i32
    %c0_i32_0 = arith.constant 0 : i32
    %c0_i32_1 = arith.constant 0 : i32
    return %c0_i32, %c0_i32_0 : i32, i32
  }
  func.func @transform_3(%arg0: i32) -> (i32, i32) {
    %c0_i32 = arith.constant 0 : i32
    %c0_i32_0 = arith.constant 0 : i32
    %c0_i32_1 = arith.constant 0 : i32
    return %c0_i32, %c0_i32_0 : i32, i32
  }
  func.func @transform_4(%arg0: i32) -> (i32, i32) {
    %c0_i32 = arith.constant 0 : i32
    %c0_i32_0 = arith.constant 0 : i32
    %c0_i32_1 = arith.constant 0 : i32
    return %c0_i32, %c0_i32_0 : i32, i32
  }
  func.func @transform_5(%arg0: i32) -> (i32, i32) {
    %c0_i32 = arith.constant 0 : i32
    %c0_i32_0 = arith.constant 0 : i32
    return %arg0, %c0_i32 : i32, i32
  }
  func.func @transform_6(%arg0: i32) -> (i32, i32) {
    %c0_i32 = arith.constant 0 : i32
    %c0_i32_0 = arith.constant 0 : i32
    return %arg0, %c0_i32 : i32, i32
  }
  func.func @transform_7(%arg0: i32) -> (i32, i32) {
    %c0_i32 = arith.constant 0 : i32
    %c0_i32_0 = arith.constant 0 : i32
    return %arg0, %c0_i32 : i32, i32
  }
}

module attributes {stable_mosaic.version = 11 : i64} {
  func.func @ln_linear_kernel(%arg0: i32, %arg1: memref<16x32xf32, #tpu.memory_space<vmem>>, %arg2: memref<1x32xf32, #tpu.memory_space<vmem>>, %arg3: memref<1x32xf32, #tpu.memory_space<vmem>>, %arg4: memref<32x32xbf16, #tpu.memory_space<vmem>>, %arg5: memref<1x32xf32, #tpu.memory_space<vmem>>, %arg6: memref<16x32xbf16, #tpu.memory_space<vmem>>) attributes {dimension_semantics = [#tpu.dimension_semantics<parallel>], iteration_bounds = array<i64: 1>, scalar_prefetch = 0 : i64, scratch_operands = 0 : i64, tpu.core_type = #tpu.core_type<tc>, window_params = [{transform_indices = @transform_0, window_bounds = array<i64: 16, 32>}, {pipeline_mode = #tpu.pipeline_mode<synchronous>, transform_indices = @transform_1, window_bounds = array<i64: 1, 32>}, {pipeline_mode = #tpu.pipeline_mode<synchronous>, transform_indices = @transform_2, window_bounds = array<i64: 1, 32>}, {pipeline_mode = #tpu.pipeline_mode<synchronous>, transform_indices = @transform_3, window_bounds = array<i64: 32, 32>}, {pipeline_mode = #tpu.pipeline_mode<synchronous>, transform_indices = @transform_4, window_bounds = array<i64: 1, 32>}, {transform_indices = @transform_5, window_bounds = array<i64: 16, 32>}]} {
    %c0 = arith.constant 0 : index
    %c0_0 = arith.constant 0 : index
    %0 = vector.load %arg1[%c0, %c0_0] : memref<16x32xf32, #tpu.memory_space<vmem>>, vector<16x32xf32>
    %c0_1 = arith.constant 0 : index
    %c0_2 = arith.constant 0 : index
    %1 = vector.load %arg2[%c0_1, %c0_2] : memref<1x32xf32, #tpu.memory_space<vmem>>, vector<1x32xf32>
    %c0_3 = arith.constant 0 : index
    %c0_4 = arith.constant 0 : index
    %2 = vector.load %arg3[%c0_3, %c0_4] : memref<1x32xf32, #tpu.memory_space<vmem>>, vector<1x32xf32>
    %cst = arith.constant dense<0.000000e+00> : vector<16xf32>
    %3 = vector.multi_reduction <add>, %0, %cst [1] : vector<16x32xf32> to vector<16xf32>
    %4 = vector.shape_cast %3 : vector<16xf32> to vector<16x1xf32>
    %cst_5 = arith.constant 3.200000e+01 : f32
    %5 = vector.broadcast %cst_5 : f32 to vector<16x1xf32>
    %6 = arith.divf %4, %5 : vector<16x1xf32>
    %7 = vector.broadcast %6 : vector<16x1xf32> to vector<16x32xf32>
    %8 = arith.subf %0, %7 : vector<16x32xf32>
    %9 = arith.mulf %8, %8 : vector<16x32xf32>
    %cst_6 = arith.constant dense<0.000000e+00> : vector<16xf32>
    %10 = vector.multi_reduction <add>, %9, %cst_6 [1] : vector<16x32xf32> to vector<16xf32>
    %11 = vector.shape_cast %10 : vector<16xf32> to vector<16x1xf32>
    %cst_7 = arith.constant 3.100000e+01 : f32
    %12 = vector.broadcast %cst_7 : f32 to vector<16x1xf32>
    %13 = arith.divf %11, %12 : vector<16x1xf32>
    %14 = vector.broadcast %1 : vector<1x32xf32> to vector<16x32xf32>
    %15 = arith.mulf %14, %8 : vector<16x32xf32>
    %16 = math.sqrt %13 : vector<16x1xf32>
    %cst_8 = arith.constant 9.99999997E-7 : f32
    %17 = vector.broadcast %cst_8 : f32 to vector<16x1xf32>
    %18 = arith.addf %16, %17 : vector<16x1xf32>
    %19 = vector.broadcast %18 : vector<16x1xf32> to vector<16x32xf32>
    %20 = arith.divf %15, %19 : vector<16x32xf32>
    %21 = vector.broadcast %2 : vector<1x32xf32> to vector<16x32xf32>
    %22 = arith.addf %20, %21 : vector<16x32xf32>
    %23 = arith.truncf %22 : vector<16x32xf32> to vector<16x32xbf16>
    %c0_9 = arith.constant 0 : index
    %c0_10 = arith.constant 0 : index
    %24 = vector.load %arg4[%c0_9, %c0_10] : memref<32x32xbf16, #tpu.memory_space<vmem>>, vector<32x32xbf16>
    %cst_11 = arith.constant dense<0.000000e+00> : vector<16x32xf32>
    %25 = tpu.matmul %23, %24, %cst_11 {dimension_numbers = #tpu.dot_dimension_numbers<[1], [0], [0], [1], [0, 0, 1, 1], [], []>} : vector<16x32xbf16>, vector<32x32xbf16>, vector<16x32xf32> -> vector<16x32xf32>
    %c0_12 = arith.constant 0 : index
    %c0_13 = arith.constant 0 : index
    %26 = vector.load %arg5[%c0_12, %c0_13] : memref<1x32xf32, #tpu.memory_space<vmem>>, vector<1x32xf32>
    %27 = vector.broadcast %26 : vector<1x32xf32> to vector<16x32xf32>
    %28 = arith.addf %25, %27 : vector<16x32xf32>
    %29 = arith.truncf %28 : vector<16x32xf32> to vector<16x32xbf16>
    %c0_14 = arith.constant 0 : index
    %c0_15 = arith.constant 0 : index
    %30 = vector.load %arg6[%c0_14, %c0_15] : memref<16x32xbf16, #tpu.memory_space<vmem>>, vector<16x32xbf16>
    tpu.vector_store %arg6[%c0_14, %c0_15], %29 {strides = array<i32>} : memref<16x32xbf16, #tpu.memory_space<vmem>>, vector<16x32xbf16>,
    return
  }
  func.func @transform_0(%arg0: i32) -> (i32, i32) {
    %c0_i32 = arith.constant 0 : i32
    %c0_i32_0 = arith.constant 0 : i32
    return %arg0, %c0_i32 : i32, i32
  }
  func.func @transform_1(%arg0: i32) -> (i32, i32) {
    %c0_i32 = arith.constant 0 : i32
    %c0_i32_0 = arith.constant 0 : i32
    %c0_i32_1 = arith.constant 0 : i32
    return %c0_i32, %c0_i32_0 : i32, i32
  }
  func.func @transform_2(%arg0: i32) -> (i32, i32) {
    %c0_i32 = arith.constant 0 : i32
    %c0_i32_0 = arith.constant 0 : i32
    %c0_i32_1 = arith.constant 0 : i32
    return %c0_i32, %c0_i32_0 : i32, i32
  }
  func.func @transform_3(%arg0: i32) -> (i32, i32) {
    %c0_i32 = arith.constant 0 : i32
    %c0_i32_0 = arith.constant 0 : i32
    %c0_i32_1 = arith.constant 0 : i32
    return %c0_i32, %c0_i32_0 : i32, i32
  }
  func.func @transform_4(%arg0: i32) -> (i32, i32) {
    %c0_i32 = arith.constant 0 : i32
    %c0_i32_0 = arith.constant 0 : i32
    %c0_i32_1 = arith.constant 0 : i32
    return %c0_i32, %c0_i32_0 : i32, i32
  }
  func.func @transform_5(%arg0: i32) -> (i32, i32) {
    %c0_i32 = arith.constant 0 : i32
    %c0_i32_0 = arith.constant 0 : i32
    return %arg0, %c0_i32 : i32, i32
  }
}

module attributes {stable_mosaic.version = 11 : i64} {
  func.func @attn_outproj_kernel(%arg0: i32, %arg1: i32, %arg2: memref<1x8x32xbf16, #tpu.memory_space<vmem>>, %arg3: memref<1x8x32xbf16, #tpu.memory_space<vmem>>, %arg4: memref<1x8x32xbf16, #tpu.memory_space<vmem>>, %arg5: memref<8x8xf32, #tpu.memory_space<vmem>>, %arg6: memref<32x32xbf16, #tpu.memory_space<vmem>>, %arg7: memref<1x32xf32, #tpu.memory_space<vmem>>, %arg8: memref<1x8x32xf32, #tpu.memory_space<vmem>>, %arg9: memref<1x8x32xf32, #tpu.memory_space<vmem>>) attributes {dimension_semantics = [#tpu.dimension_semantics<parallel>, #tpu.dimension_semantics<parallel>], iteration_bounds = array<i64: 2, 1>, scalar_prefetch = 0 : i64, scratch_operands = 0 : i64, tpu.core_type = #tpu.core_type<tc>, window_params = [{transform_indices = @transform_0, window_bounds = array<i64: 1, 8, 32>}, {transform_indices = @transform_1, window_bounds = array<i64: 1, 8, 32>}, {transform_indices = @transform_2, window_bounds = array<i64: 1, 8, 32>}, {transform_indices = @transform_3, window_bounds = array<i64: 8, 8>}, {pipeline_mode = #tpu.pipeline_mode<synchronous>, transform_indices = @transform_4, window_bounds = array<i64: 32, 32>}, {pipeline_mode = #tpu.pipeline_mode<synchronous>, transform_indices = @transform_5, window_bounds = array<i64: 1, 32>}, {transform_indices = @transform_6, window_bounds = array<i64: 1, 8, 32>}, {transform_indices = @transform_7, window_bounds = array<i64: 1, 8, 32>}]} {
    %c0 = arith.constant 0 : index
    %c0_0 = arith.constant 0 : index
    %c0_1 = arith.constant 0 : index
    %0 = vector.load %arg2[%c0, %c0_0, %c0_1] : memref<1x8x32xbf16, #tpu.memory_space<vmem>>, vector<1x8x32xbf16>
    %1 = vector.shape_cast %0 : vector<1x8x32xbf16> to vector<8x32xbf16>
    %c0_2 = arith.constant 0 : index
    %c0_3 = arith.constant 0 : index
    %c0_4 = arith.constant 0 : index
    %2 = vector.load %arg3[%c0_2, %c0_3, %c0_4] : memref<1x8x32xbf16, #tpu.memory_space<vmem>>, vector<1x8x32xbf16>
    %3 = vector.shape_cast %2 : vector<1x8x32xbf16> to vector<8x32xbf16>
    %c0_5 = arith.constant 0 : index
    %c0_6 = arith.constant 0 : index
    %c0_7 = arith.constant 0 : index
    %4 = vector.load %arg4[%c0_5, %c0_6, %c0_7] : memref<1x8x32xbf16, #tpu.memory_space<vmem>>, vector<1x8x32xbf16>
    %5 = vector.shape_cast %4 : vector<1x8x32xbf16> to vector<8x32xbf16>
    %c0_8 = arith.constant 0 : index
    %c0_9 = arith.constant 0 : index
    %6 = vector.load %arg5[%c0_8, %c0_9] : memref<8x8xf32, #tpu.memory_space<vmem>>, vector<8x8xf32>
    %cst = arith.constant 0.000000e+00 : f32
    %7 = vector.broadcast %cst : f32 to vector<8x8xf32>
    %8 = arith.cmpf ogt, %6, %7 : vector<8x8xf32>
    %9 = vector.extract_strided_slice %1 {offsets = [0, 0], sizes = [8, 8], strides = [1, 1]} : vector<8x32xbf16> to vector<8x8xbf16>
    %10 = vector.extract_strided_slice %3 {offsets = [0, 0], sizes = [8, 8], strides = [1, 1]} : vector<8x32xbf16> to vector<8x8xbf16>
    %11 = vector.extract_strided_slice %5 {offsets = [0, 0], sizes = [8, 8], strides = [1, 1]} : vector<8x32xbf16> to vector<8x8xbf16>
    %cst_10 = arith.constant dense<0.000000e+00> : vector<8x8xf32>
    %12 = tpu.matmul %9, %10, %cst_10 {dimension_numbers = #tpu.dot_dimension_numbers<[1], [1], [0], [0], [0, 0, 1, 0], [], []>} : vector<8x8xbf16>, vector<8x8xbf16>, vector<8x8xf32> -> vector<8x8xf32>
    %cst_11 = arith.constant 0.353553385 : f32
    %13 = vector.broadcast %cst_11 : f32 to vector<8x8xf32>
    %14 = arith.mulf %12, %13 : vector<8x8xf32>
    %cst_12 = arith.constant -1.000000e+09 : f32
    %15 = vector.broadcast %cst_12 : f32 to vector<8x8xf32>
    %16 = arith.select %8, %14, %15 : vector<8x8xi1>, vector<8x8xf32>
    %cst_13 = arith.constant dense<0xFF800000> : vector<8xf32>
    %17 = vector.multi_reduction <maximumf>, %16, %cst_13 [1] : vector<8x8xf32> to vector<8xf32>
    %18 = vector.shape_cast %17 : vector<8xf32> to vector<8x1xf32>
    %19 = vector.broadcast %18 : vector<8x1xf32> to vector<8x8xf32>
    %20 = arith.subf %16, %19 : vector<8x8xf32>
    %21 = math.exp %20 : vector<8x8xf32>
    %cst_14 = arith.constant dense<0.000000e+00> : vector<8xf32>
    %22 = vector.multi_reduction <add>, %21, %cst_14 [1] : vector<8x8xf32> to vector<8xf32>
    %23 = vector.shape_cast %22 : vector<8xf32> to vector<8x1xf32>
    %24 = tpu.reciprocal %23 {approx = true} : vector<8x1xf32> -> vector<8x1xf32>
    %25 = vector.broadcast %24 : vector<8x1xf32> to vector<8x8xf32>
    %26 = arith.mulf %21, %25 : vector<8x8xf32>
    %27 = arith.truncf %26 : vector<8x8xf32> to vector<8x8xbf16>
    %cst_15 = arith.constant dense<0.000000e+00> : vector<8x8xf32>
    %28 = tpu.matmul %27, %11, %cst_15 {dimension_numbers = #tpu.dot_dimension_numbers<[1], [0], [0], [1], [0, 0, 1, 1], [], []>} : vector<8x8xbf16>, vector<8x8xbf16>, vector<8x8xf32> -> vector<8x8xf32>
    %29 = vector.extract_strided_slice %1 {offsets = [0, 8], sizes = [8, 8], strides = [1, 1]} : vector<8x32xbf16> to vector<8x8xbf16>
    %30 = vector.extract_strided_slice %3 {offsets = [0, 8], sizes = [8, 8], strides = [1, 1]} : vector<8x32xbf16> to vector<8x8xbf16>
    %31 = vector.extract_strided_slice %5 {offsets = [0, 8], sizes = [8, 8], strides = [1, 1]} : vector<8x32xbf16> to vector<8x8xbf16>
    %cst_16 = arith.constant dense<0.000000e+00> : vector<8x8xf32>
    %32 = tpu.matmul %29, %30, %cst_16 {dimension_numbers = #tpu.dot_dimension_numbers<[1], [1], [0], [0], [0, 0, 1, 0], [], []>} : vector<8x8xbf16>, vector<8x8xbf16>, vector<8x8xf32> -> vector<8x8xf32>
    %cst_17 = arith.constant 0.353553385 : f32
    %33 = vector.broadcast %cst_17 : f32 to vector<8x8xf32>
    %34 = arith.mulf %32, %33 : vector<8x8xf32>
    %cst_18 = arith.constant -1.000000e+09 : f32
    %35 = vector.broadcast %cst_18 : f32 to vector<8x8xf32>
    %36 = arith.select %8, %34, %35 : vector<8x8xi1>, vector<8x8xf32>
    %cst_19 = arith.constant dense<0xFF800000> : vector<8xf32>
    %37 = vector.multi_reduction <maximumf>, %36, %cst_19 [1] : vector<8x8xf32> to vector<8xf32>
    %38 = vector.shape_cast %37 : vector<8xf32> to vector<8x1xf32>
    %39 = vector.broadcast %38 : vector<8x1xf32> to vector<8x8xf32>
    %40 = arith.subf %36, %39 : vector<8x8xf32>
    %41 = math.exp %40 : vector<8x8xf32>
    %cst_20 = arith.constant dense<0.000000e+00> : vector<8xf32>
    %42 = vector.multi_reduction <add>, %41, %cst_20 [1] : vector<8x8xf32> to vector<8xf32>
    %43 = vector.shape_cast %42 : vector<8xf32> to vector<8x1xf32>
    %44 = tpu.reciprocal %43 {approx = true} : vector<8x1xf32> -> vector<8x1xf32>
    %45 = vector.broadcast %44 : vector<8x1xf32> to vector<8x8xf32>
    %46 = arith.mulf %41, %45 : vector<8x8xf32>
    %47 = arith.truncf %46 : vector<8x8xf32> to vector<8x8xbf16>
    %cst_21 = arith.constant dense<0.000000e+00> : vector<8x8xf32>
    %48 = tpu.matmul %47, %31, %cst_21 {dimension_numbers = #tpu.dot_dimension_numbers<[1], [0], [0], [1], [0, 0, 1, 1], [], []>} : vector<8x8xbf16>, vector<8x8xbf16>, vector<8x8xf32> -> vector<8x8xf32>
    %49 = vector.extract_strided_slice %1 {offsets = [0, 16], sizes = [8, 8], strides = [1, 1]} : vector<8x32xbf16> to vector<8x8xbf16>
    %50 = vector.extract_strided_slice %3 {offsets = [0, 16], sizes = [8, 8], strides = [1, 1]} : vector<8x32xbf16> to vector<8x8xbf16>
    %51 = vector.extract_strided_slice %5 {offsets = [0, 16], sizes = [8, 8], strides = [1, 1]} : vector<8x32xbf16> to vector<8x8xbf16>
    %cst_22 = arith.constant dense<0.000000e+00> : vector<8x8xf32>
    %52 = tpu.matmul %49, %50, %cst_22 {dimension_numbers = #tpu.dot_dimension_numbers<[1], [1], [0], [0], [0, 0, 1, 0], [], []>} : vector<8x8xbf16>, vector<8x8xbf16>, vector<8x8xf32> -> vector<8x8xf32>
    %cst_23 = arith.constant 0.353553385 : f32
    %53 = vector.broadcast %cst_23 : f32 to vector<8x8xf32>
    %54 = arith.mulf %52, %53 : vector<8x8xf32>
    %cst_24 = arith.constant -1.000000e+09 : f32
    %55 = vector.broadcast %cst_24 : f32 to vector<8x8xf32>
    %56 = arith.select %8, %54, %55 : vector<8x8xi1>, vector<8x8xf32>
    %cst_25 = arith.constant dense<0xFF800000> : vector<8xf32>
    %57 = vector.multi_reduction <maximumf>, %56, %cst_25 [1] : vector<8x8xf32> to vector<8xf32>
    %58 = vector.shape_cast %57 : vector<8xf32> to vector<8x1xf32>
    %59 = vector.broadcast %58 : vector<8x1xf32> to vector<8x8xf32>
    %60 = arith.subf %56, %59 : vector<8x8xf32>
    %61 = math.exp %60 : vector<8x8xf32>
    %cst_26 = arith.constant dense<0.000000e+00> : vector<8xf32>
    %62 = vector.multi_reduction <add>, %61, %cst_26 [1] : vector<8x8xf32> to vector<8xf32>
    %63 = vector.shape_cast %62 : vector<8xf32> to vector<8x1xf32>
    %64 = tpu.reciprocal %63 {approx = true} : vector<8x1xf32> -> vector<8x1xf32>
    %65 = vector.broadcast %64 : vector<8x1xf32> to vector<8x8xf32>
    %66 = arith.mulf %61, %65 : vector<8x8xf32>
    %67 = arith.truncf %66 : vector<8x8xf32> to vector<8x8xbf16>
    %cst_27 = arith.constant dense<0.000000e+00> : vector<8x8xf32>
    %68 = tpu.matmul %67, %51, %cst_27 {dimension_numbers = #tpu.dot_dimension_numbers<[1], [0], [0], [1], [0, 0, 1, 1], [], []>} : vector<8x8xbf16>, vector<8x8xbf16>, vector<8x8xf32> -> vector<8x8xf32>
    %69 = vector.extract_strided_slice %1 {offsets = [0, 24], sizes = [8, 8], strides = [1, 1]} : vector<8x32xbf16> to vector<8x8xbf16>
    %70 = vector.extract_strided_slice %3 {offsets = [0, 24], sizes = [8, 8], strides = [1, 1]} : vector<8x32xbf16> to vector<8x8xbf16>
    %71 = vector.extract_strided_slice %5 {offsets = [0, 24], sizes = [8, 8], strides = [1, 1]} : vector<8x32xbf16> to vector<8x8xbf16>
    %cst_28 = arith.constant dense<0.000000e+00> : vector<8x8xf32>
    %72 = tpu.matmul %69, %70, %cst_28 {dimension_numbers = #tpu.dot_dimension_numbers<[1], [1], [0], [0], [0, 0, 1, 0], [], []>} : vector<8x8xbf16>, vector<8x8xbf16>, vector<8x8xf32> -> vector<8x8xf32>
    %cst_29 = arith.constant 0.353553385 : f32
    %73 = vector.broadcast %cst_29 : f32 to vector<8x8xf32>
    %74 = arith.mulf %72, %73 : vector<8x8xf32>
    %cst_30 = arith.constant -1.000000e+09 : f32
    %75 = vector.broadcast %cst_30 : f32 to vector<8x8xf32>
    %76 = arith.select %8, %74, %75 : vector<8x8xi1>, vector<8x8xf32>
    %cst_31 = arith.constant dense<0xFF800000> : vector<8xf32>
    %77 = vector.multi_reduction <maximumf>, %76, %cst_31 [1] : vector<8x8xf32> to vector<8xf32>
    %78 = vector.shape_cast %77 : vector<8xf32> to vector<8x1xf32>
    %79 = vector.broadcast %78 : vector<8x1xf32> to vector<8x8xf32>
    %80 = arith.subf %76, %79 : vector<8x8xf32>
    %81 = math.exp %80 : vector<8x8xf32>
    %cst_32 = arith.constant dense<0.000000e+00> : vector<8xf32>
    %82 = vector.multi_reduction <add>, %81, %cst_32 [1] : vector<8x8xf32> to vector<8xf32>
    %83 = vector.shape_cast %82 : vector<8xf32> to vector<8x1xf32>
    %84 = tpu.reciprocal %83 {approx = true} : vector<8x1xf32> -> vector<8x1xf32>
    %85 = vector.broadcast %84 : vector<8x1xf32> to vector<8x8xf32>
    %86 = arith.mulf %81, %85 : vector<8x8xf32>
    %87 = arith.truncf %86 : vector<8x8xf32> to vector<8x8xbf16>
    %cst_33 = arith.constant dense<0.000000e+00> : vector<8x8xf32>
    %88 = tpu.matmul %87, %71, %cst_33 {dimension_numbers = #tpu.dot_dimension_numbers<[1], [0], [0], [1], [0, 0, 1, 1], [], []>} : vector<8x8xbf16>, vector<8x8xbf16>, vector<8x8xf32> -> vector<8x8xf32>
    %89 = tpu.concatenate %28, %48, %68, %88 in 1 : vector<8x8xf32>, vector<8x8xf32>, vector<8x8xf32>, vector<8x8xf32> -> vector<8x32xf32>
    %c0_34 = arith.constant 0 : index
    %c0_35 = arith.constant 0 : index
    %c0_36 = arith.constant 0 : index
    %90 = vector.load %arg8[%c0_34, %c0_35, %c0_36] : memref<1x8x32xf32, #tpu.memory_space<vmem>>, vector<1x8x32xf32>
    %91 = vector.shape_cast %90 : vector<1x8x32xf32> to vector<8x32xf32>
    %92 = arith.truncf %89 : vector<8x32xf32> to vector<8x32xbf16>
    %c0_37 = arith.constant 0 : index
    %c0_38 = arith.constant 0 : index
    %93 = vector.load %arg6[%c0_37, %c0_38] : memref<32x32xbf16, #tpu.memory_space<vmem>>, vector<32x32xbf16>
    %cst_39 = arith.constant dense<0.000000e+00> : vector<8x32xf32>
    %94 = tpu.matmul %92, %93, %cst_39 {dimension_numbers = #tpu.dot_dimension_numbers<[1], [0], [0], [1], [0, 0, 1, 1], [], []>} : vector<8x32xbf16>, vector<32x32xbf16>, vector<8x32xf32> -> vector<8x32xf32>
    %95 = arith.addf %91, %94 : vector<8x32xf32>
    %c0_40 = arith.constant 0 : index
    %c0_41 = arith.constant 0 : index
    %96 = vector.load %arg7[%c0_40, %c0_41] : memref<1x32xf32, #tpu.memory_space<vmem>>, vector<1x32xf32>
    %97 = vector.broadcast %96 : vector<1x32xf32> to vector<8x32xf32>
    %98 = arith.addf %95, %97 : vector<8x32xf32>
    %c0_42 = arith.constant 0 : index
    %c0_43 = arith.constant 0 : index
    %c0_44 = arith.constant 0 : index
    %99 = vector.load %arg9[%c0_42, %c0_43, %c0_44] : memref<1x8x32xf32, #tpu.memory_space<vmem>>, vector<1x8x32xf32>
    %100 = vector.shape_cast %99 : vector<1x8x32xf32> to vector<8x32xf32>
    %101 = vector.shape_cast %98 : vector<8x32xf32> to vector<1x8x32xf32>
    tpu.vector_store %arg9[%c0_42, %c0_43, %c0_44], %101 {strides = array<i32>} : memref<1x8x32xf32, #tpu.memory_space<vmem>>, vector<1x8x32xf32>,
    return
  }
  func.func @transform_0(%arg0: i32, %arg1: i32) -> (i32, i32, i32) {
    %c0_i32 = arith.constant 0 : i32
    %c0_i32_0 = arith.constant 0 : i32
    return %arg0, %arg1, %c0_i32 : i32, i32, i32
  }
  func.func @transform_1(%arg0: i32, %arg1: i32) -> (i32, i32, i32) {
    %c0_i32 = arith.constant 0 : i32
    %c0_i32_0 = arith.constant 0 : i32
    %c0_i32_1 = arith.constant 0 : i32
    return %arg0, %c0_i32, %c0_i32_0 : i32, i32, i32
  }
  func.func @transform_2(%arg0: i32, %arg1: i32) -> (i32, i32, i32) {
    %c0_i32 = arith.constant 0 : i32
    %c0_i32_0 = arith.constant 0 : i32
    %c0_i32_1 = arith.constant 0 : i32
    return %arg0, %c0_i32, %c0_i32_0 : i32, i32, i32
  }
  func.func @transform_3(%arg0: i32, %arg1: i32) -> (i32, i32) {
    %c0_i32 = arith.constant 0 : i32
    %c0_i32_0 = arith.constant 0 : i32
    return %arg1, %c0_i32 : i32, i32
  }
  func.func @transform_4(%arg0: i32, %arg1: i32) -> (i32, i32) {
    %c0_i32 = arith.constant 0 : i32
    %c0_i32_0 = arith.constant 0 : i32
    %c0_i32_1 = arith.constant 0 : i32
    return %c0_i32, %c0_i32_0 : i32, i32
  }
  func.func @transform_5(%arg0: i32, %arg1: i32) -> (i32, i32) {
    %c0_i32 = arith.constant 0 : i32
    %c0_i32_0 = arith.constant 0 : i32
    %c0_i32_1 = arith.constant 0 : i32
    return %c0_i32, %c0_i32_0 : i32, i32
  }
  func.func @transform_6(%arg0: i32, %arg1: i32) -> (i32, i32, i32) {
    %c0_i32 = arith.constant 0 : i32
    %c0_i32_0 = arith.constant 0 : i32
    return %arg0, %arg1, %c0_i32 : i32, i32, i32
  }
  func.func @transform_7(%arg0: i32, %arg1: i32) -> (i32, i32, i32) {
    %c0_i32 = arith.constant 0 : i32
    %c0_i32_0 = arith.constant 0 : i32
    return %arg0, %arg1, %c0_i32 : i32, i32, i32
  }
}

module attributes {stable_mosaic.version = 11 : i64} {
  func.func @kv_kernel(%arg0: i32, %arg1: memref<16x32xf32, #tpu.memory_space<vmem>>, %arg2: memref<32x64xbf16, #tpu.memory_space<vmem>>, %arg3: memref<1x64xf32, #tpu.memory_space<vmem>>, %arg4: memref<16x32xbf16, #tpu.memory_space<vmem>>, %arg5: memref<16x32xbf16, #tpu.memory_space<vmem>>) attributes {dimension_semantics = [#tpu.dimension_semantics<parallel>], iteration_bounds = array<i64: 1>, scalar_prefetch = 0 : i64, scratch_operands = 0 : i64, tpu.core_type = #tpu.core_type<tc>, window_params = [{transform_indices = @transform_0, window_bounds = array<i64: 16, 32>}, {pipeline_mode = #tpu.pipeline_mode<synchronous>, transform_indices = @transform_1, window_bounds = array<i64: 32, 64>}, {pipeline_mode = #tpu.pipeline_mode<synchronous>, transform_indices = @transform_2, window_bounds = array<i64: 1, 64>}, {transform_indices = @transform_3, window_bounds = array<i64: 16, 32>}, {transform_indices = @transform_4, window_bounds = array<i64: 16, 32>}]} {
    %c0 = arith.constant 0 : index
    %c0_0 = arith.constant 0 : index
    %0 = vector.load %arg1[%c0, %c0_0] : memref<16x32xf32, #tpu.memory_space<vmem>>, vector<16x32xf32>
    %1 = arith.truncf %0 : vector<16x32xf32> to vector<16x32xbf16>
    %c0_1 = arith.constant 0 : index
    %c0_2 = arith.constant 0 : index
    %2 = vector.load %arg2[%c0_1, %c0_2] : memref<32x64xbf16, #tpu.memory_space<vmem>>, vector<32x64xbf16>
    %cst = arith.constant dense<0.000000e+00> : vector<16x64xf32>
    %3 = tpu.matmul %1, %2, %cst {dimension_numbers = #tpu.dot_dimension_numbers<[1], [0], [0], [1], [0, 0, 1, 1], [], []>} : vector<16x32xbf16>, vector<32x64xbf16>, vector<16x64xf32> -> vector<16x64xf32>
    %c0_3 = arith.constant 0 : index
    %c0_4 = arith.constant 0 : index
    %4 = vector.load %arg3[%c0_3, %c0_4] : memref<1x64xf32, #tpu.memory_space<vmem>>, vector<1x64xf32>
    %5 = vector.broadcast %4 : vector<1x64xf32> to vector<16x64xf32>
    %6 = arith.addf %3, %5 : vector<16x64xf32>
    %7 = vector.extract_strided_slice %6 {offsets = [0, 0], sizes = [16, 32], strides = [1, 1]} : vector<16x64xf32> to vector<16x32xf32>
    %8 = arith.truncf %7 : vector<16x32xf32> to vector<16x32xbf16>
    %c0_5 = arith.constant 0 : index
    %c0_6 = arith.constant 0 : index
    %9 = vector.load %arg4[%c0_5, %c0_6] : memref<16x32xbf16, #tpu.memory_space<vmem>>, vector<16x32xbf16>
    tpu.vector_store %arg4[%c0_5, %c0_6], %8 {strides = array<i32>} : memref<16x32xbf16, #tpu.memory_space<vmem>>, vector<16x32xbf16>,
    %10 = vector.extract_strided_slice %6 {offsets = [0, 32], sizes = [16, 32], strides = [1, 1]} : vector<16x64xf32> to vector<16x32xf32>
    %11 = arith.truncf %10 : vector<16x32xf32> to vector<16x32xbf16>
    %c0_7 = arith.constant 0 : index
    %c0_8 = arith.constant 0 : index
    %12 = vector.load %arg5[%c0_7, %c0_8] : memref<16x32xbf16, #tpu.memory_space<vmem>>, vector<16x32xbf16>
    tpu.vector_store %arg5[%c0_7, %c0_8], %11 {strides = array<i32>} : memref<16x32xbf16, #tpu.memory_space<vmem>>, vector<16x32xbf16>,
    return
  }
  func.func @transform_0(%arg0: i32) -> (i32, i32) {
    %c0_i32 = arith.constant 0 : i32
    %c0_i32_0 = arith.constant 0 : i32
    return %arg0, %c0_i32 : i32, i32
  }
  func.func @transform_1(%arg0: i32) -> (i32, i32) {
    %c0_i32 = arith.constant 0 : i32
    %c0_i32_0 = arith.constant 0 : i32
    %c0_i32_1 = arith.constant 0 : i32
    return %c0_i32, %c0_i32_0 : i32, i32
  }
  func.func @transform_2(%arg0: i32) -> (i32, i32) {
    %c0_i32 = arith.constant 0 : i32
    %c0_i32_0 = arith.constant 0 : i32
    %c0_i32_1 = arith.constant 0 : i32
    return %c0_i32, %c0_i32_0 : i32, i32
  }
  func.func @transform_3(%arg0: i32) -> (i32, i32) {
    %c0_i32 = arith.constant 0 : i32
    %c0_i32_0 = arith.constant 0 : i32
    return %arg0, %c0_i32 : i32, i32
  }
  func.func @transform_4(%arg0: i32) -> (i32, i32) {
    %c0_i32 = arith.constant 0 : i32
    %c0_i32_0 = arith.constant 0 : i32
    return %arg0, %c0_i32 : i32, i32
  }
}

module attributes {stable_mosaic.version = 11 : i64} {
  func.func @ln_ffn_residual_kernel(%arg0: i32, %arg1: memref<16x32xf32, #tpu.memory_space<vmem>>, %arg2: memref<1x32xf32, #tpu.memory_space<vmem>>, %arg3: memref<1x32xf32, #tpu.memory_space<vmem>>, %arg4: memref<32x64xbf16, #tpu.memory_space<vmem>>, %arg5: memref<1x64xf32, #tpu.memory_space<vmem>>, %arg6: memref<64x32xbf16, #tpu.memory_space<vmem>>, %arg7: memref<1x32xf32, #tpu.memory_space<vmem>>, %arg8: memref<16x32xf32, #tpu.memory_space<vmem>>) attributes {dimension_semantics = [#tpu.dimension_semantics<parallel>], iteration_bounds = array<i64: 1>, scalar_prefetch = 0 : i64, scratch_operands = 0 : i64, tpu.core_type = #tpu.core_type<tc>, window_params = [{transform_indices = @transform_0, window_bounds = array<i64: 16, 32>}, {pipeline_mode = #tpu.pipeline_mode<synchronous>, transform_indices = @transform_1, window_bounds = array<i64: 1, 32>}, {pipeline_mode = #tpu.pipeline_mode<synchronous>, transform_indices = @transform_2, window_bounds = array<i64: 1, 32>}, {pipeline_mode = #tpu.pipeline_mode<synchronous>, transform_indices = @transform_3, window_bounds = array<i64: 32, 64>}, {pipeline_mode = #tpu.pipeline_mode<synchronous>, transform_indices = @transform_4, window_bounds = array<i64: 1, 64>}, {pipeline_mode = #tpu.pipeline_mode<synchronous>, transform_indices = @transform_5, window_bounds = array<i64: 64, 32>}, {pipeline_mode = #tpu.pipeline_mode<synchronous>, transform_indices = @transform_6, window_bounds = array<i64: 1, 32>}, {transform_indices = @transform_7, window_bounds = array<i64: 16, 32>}]} {
    %c0 = arith.constant 0 : index
    %c0_0 = arith.constant 0 : index
    %0 = vector.load %arg1[%c0, %c0_0] : memref<16x32xf32, #tpu.memory_space<vmem>>, vector<16x32xf32>
    %c0_1 = arith.constant 0 : index
    %c0_2 = arith.constant 0 : index
    %1 = vector.load %arg2[%c0_1, %c0_2] : memref<1x32xf32, #tpu.memory_space<vmem>>, vector<1x32xf32>
    %c0_3 = arith.constant 0 : index
    %c0_4 = arith.constant 0 : index
    %2 = vector.load %arg3[%c0_3, %c0_4] : memref<1x32xf32, #tpu.memory_space<vmem>>, vector<1x32xf32>
    %cst = arith.constant dense<0.000000e+00> : vector<16xf32>
    %3 = vector.multi_reduction <add>, %0, %cst [1] : vector<16x32xf32> to vector<16xf32>
    %4 = vector.shape_cast %3 : vector<16xf32> to vector<16x1xf32>
    %cst_5 = arith.constant 3.200000e+01 : f32
    %5 = vector.broadcast %cst_5 : f32 to vector<16x1xf32>
    %6 = arith.divf %4, %5 : vector<16x1xf32>
    %7 = vector.broadcast %6 : vector<16x1xf32> to vector<16x32xf32>
    %8 = arith.subf %0, %7 : vector<16x32xf32>
    %9 = arith.mulf %8, %8 : vector<16x32xf32>
    %cst_6 = arith.constant dense<0.000000e+00> : vector<16xf32>
    %10 = vector.multi_reduction <add>, %9, %cst_6 [1] : vector<16x32xf32> to vector<16xf32>
    %11 = vector.shape_cast %10 : vector<16xf32> to vector<16x1xf32>
    %cst_7 = arith.constant 3.100000e+01 : f32
    %12 = vector.broadcast %cst_7 : f32 to vector<16x1xf32>
    %13 = arith.divf %11, %12 : vector<16x1xf32>
    %14 = vector.broadcast %1 : vector<1x32xf32> to vector<16x32xf32>
    %15 = arith.mulf %14, %8 : vector<16x32xf32>
    %16 = math.sqrt %13 : vector<16x1xf32>
    %cst_8 = arith.constant 9.99999997E-7 : f32
    %17 = vector.broadcast %cst_8 : f32 to vector<16x1xf32>
    %18 = arith.addf %16, %17 : vector<16x1xf32>
    %19 = vector.broadcast %18 : vector<16x1xf32> to vector<16x32xf32>
    %20 = arith.divf %15, %19 : vector<16x32xf32>
    %21 = vector.broadcast %2 : vector<1x32xf32> to vector<16x32xf32>
    %22 = arith.addf %20, %21 : vector<16x32xf32>
    %23 = arith.truncf %22 : vector<16x32xf32> to vector<16x32xbf16>
    %c0_9 = arith.constant 0 : index
    %c0_10 = arith.constant 0 : index
    %24 = vector.load %arg4[%c0_9, %c0_10] : memref<32x64xbf16, #tpu.memory_space<vmem>>, vector<32x64xbf16>
    %cst_11 = arith.constant dense<0.000000e+00> : vector<16x64xf32>
    %25 = tpu.matmul %23, %24, %cst_11 {dimension_numbers = #tpu.dot_dimension_numbers<[1], [0], [0], [1], [0, 0, 1, 1], [], []>} : vector<16x32xbf16>, vector<32x64xbf16>, vector<16x64xf32> -> vector<16x64xf32>
    %c0_12 = arith.constant 0 : index
    %c0_13 = arith.constant 0 : index
    %26 = vector.load %arg5[%c0_12, %c0_13] : memref<1x64xf32, #tpu.memory_space<vmem>>, vector<1x64xf32>
    %27 = vector.broadcast %26 : vector<1x64xf32> to vector<16x64xf32>
    %28 = arith.addf %25, %27 : vector<16x64xf32>
    %cst_14 = arith.constant 0.000000e+00 : f32
    %29 = vector.broadcast %cst_14 : f32 to vector<16x64xf32>
    %30 = arith.maximumf %28, %29 : vector<16x64xf32>
    %31 = arith.truncf %30 : vector<16x64xf32> to vector<16x64xbf16>
    %c0_15 = arith.constant 0 : index
    %c0_16 = arith.constant 0 : index
    %32 = vector.load %arg6[%c0_15, %c0_16] : memref<64x32xbf16, #tpu.memory_space<vmem>>, vector<64x32xbf16>
    %cst_17 = arith.constant dense<0.000000e+00> : vector<16x32xf32>
    %33 = tpu.matmul %31, %32, %cst_17 {dimension_numbers = #tpu.dot_dimension_numbers<[1], [0], [0], [1], [0, 0, 1, 1], [], []>} : vector<16x64xbf16>, vector<64x32xbf16>, vector<16x32xf32> -> vector<16x32xf32>
    %34 = arith.addf %0, %33 : vector<16x32xf32>
    %c0_18 = arith.constant 0 : index
    %c0_19 = arith.constant 0 : index
    %35 = vector.load %arg7[%c0_18, %c0_19] : memref<1x32xf32, #tpu.memory_space<vmem>>, vector<1x32xf32>
    %36 = vector.broadcast %35 : vector<1x32xf32> to vector<16x32xf32>
    %37 = arith.addf %34, %36 : vector<16x32xf32>
    %c0_20 = arith.constant 0 : index
    %c0_21 = arith.constant 0 : index
    %38 = vector.load %arg8[%c0_20, %c0_21] : memref<16x32xf32, #tpu.memory_space<vmem>>, vector<16x32xf32>
    tpu.vector_store %arg8[%c0_20, %c0_21], %37 {strides = array<i32>} : memref<16x32xf32, #tpu.memory_space<vmem>>, vector<16x32xf32>,
    return
  }
  func.func @transform_0(%arg0: i32) -> (i32, i32) {
    %c0_i32 = arith.constant 0 : i32
    %c0_i32_0 = arith.constant 0 : i32
    return %arg0, %c0_i32 : i32, i32
  }
  func.func @transform_1(%arg0: i32) -> (i32, i32) {
    %c0_i32 = arith.constant 0 : i32
    %c0_i32_0 = arith.constant 0 : i32
    %c0_i32_1 = arith.constant 0 : i32
    return %c0_i32, %c0_i32_0 : i32, i32
  }
  func.func @transform_2(%arg0: i32) -> (i32, i32) {
    %c0_i32 = arith.constant 0 : i32
    %c0_i32_0 = arith.constant 0 : i32
    %c0_i32_1 = arith.constant 0 : i32
    return %c0_i32, %c0_i32_0 : i32, i32
  }
  func.func @transform_3(%arg0: i32) -> (i32, i32) {
    %c0_i32 = arith.constant 0 : i32
    %c0_i32_0 = arith.constant 0 : i32
    %c0_i32_1 = arith.constant 0 : i32
    return %c0_i32, %c0_i32_0 : i32, i32
  }
  func.func @transform_4(%arg0: i32) -> (i32, i32) {
    %c0_i32 = arith.constant 0 : i32
    %c0_i32_0 = arith.constant 0 : i32
    %c0_i32_1 = arith.constant 0 : i32
    return %c0_i32, %c0_i32_0 : i32, i32
  }
  func.func @transform_5(%arg0: i32) -> (i32, i32) {
    %c0_i32 = arith.constant 0 : i32
    %c0_i32_0 = arith.constant 0 : i32
    %c0_i32_1 = arith.constant 0 : i32
    return %c0_i32, %c0_i32_0 : i32, i32
  }
  func.func @transform_6(%arg0: i32) -> (i32, i32) {
    %c0_i32 = arith.constant 0 : i32
    %c0_i32_0 = arith.constant 0 : i32
    %c0_i32_1 = arith.constant 0 : i32
    return %c0_i32, %c0_i32_0 : i32, i32
  }
  func.func @transform_7(%arg0: i32) -> (i32, i32) {
    %c0_i32 = arith.constant 0 : i32
    %c0_i32_0 = arith.constant 0 : i32
    return %arg0, %c0_i32 : i32, i32
  }
}

</mosaic_0001>

<llo_original>
// kernel: decoder_layer.6
$region0: #{decoder_layer.6}
  #allocation0 [shape = 'u32[]', space=smem, size = 0x4, offset = 0x4, fixed_abs, tag = 'smem constant byte address 0x4 - core index']
  #allocation1 [shape = 'u32[144,128]{1,0:T(1,128)}', space=vmem, size = 0x12000, scoped, tag = 'internal scratch']
  %s0 = inlined_call_operand.vmem [shape: f32[16,32], index: 0, kind: input, shape index: {}]
  %s1 = inlined_call_operand.vmem [shape: f32[1,32], index: 1, kind: input, shape index: {}]
  %s2 = inlined_call_operand.vmem [shape: f32[1,32], index: 2, kind: input, shape index: {}]
  %s3 = inlined_call_operand.vmem [shape: bf16[32,96], index: 3, kind: input, shape index: {}]
  %s4 = inlined_call_operand.vmem [shape: f32[1,96], index: 4, kind: input, shape index: {}]
  %s5 = inlined_call_operand.vmem [shape: bf16[16,32], index: 5, kind: output, shape index: {0}]
  %s6 = inlined_call_operand.vmem [shape: bf16[16,32], index: 6, kind: output, shape index: {1}]
  %s7 = inlined_call_operand.vmem [shape: bf16[16,32], index: 7, kind: output, shape index: {2}]
  %8 = xla_tuple %s5, %s6, %s7
  %s9 = sld [smem:[#allocation0]]
  $region46: #{decoder_layer.6} parent=0
    _
  %s11 = ssub.s32 1, %s9
  %s12 = scalar_select 0, %s11, %s9
  // Predicated region
  $region2: #{decoder_layer.6} parent=0 // pred_check
    _
  $region3: #{decoder_layer.6} parent=0 // pred_check_branch
    %14 = sbr.rel (0) target = $region5
  $region4: #{decoder_layer.6} parent=0 // pred_region
    _
  $region5: #{decoder_layer.6} parent=0 // pred_fallthru
    _
  // Predicated region
  $region6: #{decoder_layer.6} parent=0 // pred_check
    _
  $region7: #{decoder_layer.6} parent=0 // pred_check_branch
    %16 = sbr.rel (0) target = $region9
  $region8: #{decoder_layer.6} parent=0 // pred_region
    _
  $region9: #{decoder_layer.6} parent=0 // pred_fallthru
    _
  // Predicated region
  $region10: #{decoder_layer.6} parent=0 // pred_check
    _
  $region11: #{decoder_layer.6} parent=0 // pred_check_branch
    %18 = sbr.rel (0) target = $region13
  $region12: #{decoder_layer.6} parent=0 // pred_region
    _
  $region13: #{decoder_layer.6} parent=0 // pred_fallthru
    _
  // Predicated region
  $region14: #{decoder_layer.6} parent=0 // pred_check
    _
  $region15: #{decoder_layer.6} parent=0 // pred_check_branch
    %20 = sbr.rel (0) target = $region17
  $region16: #{decoder_layer.6} parent=0 // pred_region
    _
  $region17: #{decoder_layer.6} parent=0 // pred_fallthru
    _
  // Predicated region
  $region18: #{decoder_layer.6} parent=0 // pred_check
    _
  $region19: #{decoder_layer.6} parent=0 // pred_check_branch
    %22 = sbr.rel (0) target = $region21
  $region20: #{decoder_layer.6} parent=0 // pred_region
    _
  $region21: #{decoder_layer.6} parent=0 // pred_fallthru
    _
  %v24 = vld [vmem:[%s0] sm:$0xff]
  %v25 = vld [vmem:[%s0 + $0x8] sm:$0xff]
  %v26 = vld [vmem:[%s1] sm:$0x1]
  %v27 = vld [vmem:[%s2] sm:$0x1]
  %vm28 = vcmask 261120
  %v29 = vsel %vm28, %v24, 0.0
  %30 = vadd.xlane.f32.xlu0 %v29
  %v31 = vpop.xlane.xlu0 %30
  %v32 = vsel %vm28, %v25, 0.0
  %33 = vadd.xlane.f32.xlu0 %v32
  %v34 = vpop.xlane.xlu0 %33
  %v35 = vrcp.pop 32.0
  %v36 = vmul.f32 %v31, %v35
  %v37 = vmul.f32 %v34, %v35
  %v38 = vsub.f32 %v24, %v36
  %v39 = vsub.f32 %v25, %v37
  %v40 = vmul.f32 %v38, %v38
  %v41 = vmul.f32 %v39, %v39
  %v42 = vsel %vm28, %v40, 0.0
  %43 = vadd.xlane.f32.xlu0 %v42
  %v44 = vpop.xlane.xlu0 %43
  %v45 = vsel %vm28, %v41, 0.0
  %46 = vadd.xlane.f32.xlu0 %v45
  %v47 = vpop.xlane.xlu0 %46
  %v48 = vrcp.pop 31.0
  %v49 = vmul.f32 %v44, %v48
  %v50 = vmul.f32 %v47, %v48
  %v52 = vlaneseq
  %v53 = vshrl.u32 %v52, 7
  %v54 = vsub.s32 0, %v53
  %v55 = vrot.slane %v26, %v54
  %v57 = vmul.f32 %v55, %v38
  %v58 = vmul.f32 %v55, %v39
  %v59 = vrsqrt.pop %v49
  %v60 = vmul.f32 %v49, %v59
  %vm61 = vcmp.eq.f32.partialorder %v49, inf
  %v62 = vsel %vm61, %v49, %v60
  %vm63 = vcmp.eq.f32.partialorder %v49, 0.0
  %v64 = vand.u32 %v49, 2147483648
  %v65 = vsel %vm63, %v64, %v62
  %v66 = vrsqrt.pop %v50
  %v67 = vmul.f32 %v50, %v66
  %vm68 = vcmp.eq.f32.partialorder %v50, inf
  %v69 = vsel %vm68, %v50, %v67
  %vm70 = vcmp.eq.f32.partialorder %v50, 0.0
  %v71 = vand.u32 %v50, 2147483648
  %v72 = vsel %vm70, %v71, %v69
  %v73 = vadd.f32 %v65, 1e-06
  %v74 = vadd.f32 %v72, 1e-06
  %v75 = vrcp.pop %v73
  %v76 = vmul.f32 %v57, %v75
  %v77 = vrcp.pop %v74
  %v78 = vmul.f32 %v58, %v77
  %v80 = vlaneseq
  %v81 = vshrl.u32 %v80, 7
  %v82 = vsub.s32 0, %v81
  %v83 = vrot.slane %v27, %v82
  %v85 = vadd.f32 %v76, %v83
  %v86 = vadd.f32 %v78, %v83
  %v87 = vpack.c.bf16 %v86, %v85
  %v88 = vld [vmem:[%s3] sm:$0xf]
  %v89 = vld [vmem:[%s3 + $0x4] sm:$0xf]
  %v90 = vld [vmem:[%s3 + $0x8] sm:$0xf]
  %v91 = vld [vmem:[%s3 + $0xc] sm:$0xf]
  %v92 = vld [vmem:[%s4] sm:$0x1]
  %v94 = vlaneseq
  %v95 = vshrl.u32 %v94, 7
  %v96 = vsub.s32 0, %v95
  %v97 = vrot.slane %v92, %v96
  %v103 = vunpack.c.l.b16 %v88
  %v104 = vunpack.c.l.b16 %v89
  %v105 = vunpack.c.l.b16 %v90
  %v106 = vunpack.c.l.b16 %v91
  %v107 = vpack.c.b16 %v104, %v103
  %v108 = vpack.c.b16 %v106, %v105
  %v112 = vsel %vm28, %v87, 0
  %114 = vmatprep.subr.bf16.mxu0 0
  %115 = vmatpush1.bf16.msra.mxu0 %v107
  %116 = vmatprep.subr.bf16.mxu0 0
  %117 = vmatpush1.bf16.msra.mxu0 %v108
  %118 = vmatprep.subr.bf16.mxu0 0
  %119 = vmatpush1.bf16.msra.mxu0 0
  %120 = vmatprep.subr.bf16.mxu0 0
  %121 = vmatpush1.bf16.msra.mxu0 0
  %122 = vmatprep.subr.bf16.mxu0 0
  %123 = vmatpush1.bf16.msra.mxu0 0
  %124 = vmatprep.subr.bf16.mxu0 0
  %125 = vmatpush1.bf16.msra.mxu0 0
  %126 = vmatprep.subr.bf16.mxu0 0
  %127 = vmatpush1.bf16.msra.mxu0 0
  %128 = vmatprep.subr.bf16.mxu0 0
  %129 = vmatpush1.bf16.msra.mxu0 0
  %130 = vmatprep.subr.bf16.mxu0 0
  %131 = vmatpush1.bf16.msra.mxu0 0
  %132 = vmatprep.subr.bf16.mxu0 0
  %133 = vmatpush1.bf16.msra.mxu0 0
  %134 = vmatprep.subr.bf16.mxu0 0
  %135 = vmatpush1.bf16.msra.mxu0 0
  %136 = vmatprep.subr.bf16.mxu0 0
  %137 = vmatpush1.bf16.msra.mxu0 0
  %138 = vmatprep.subr.bf16.mxu0 0
  %139 = vmatpush1.bf16.msra.mxu0 0
  %140 = vmatprep.subr.bf16.mxu0 0
  %141 = vmatpush1.bf16.msra.mxu0 0
  %142 = vmatprep.subr.bf16.mxu0 0
  %143 = vmatpush1.bf16.msra.mxu0 0
  %144 = vmatprep.subr.bf16.mxu0 0
  %145 = vmatpush1.bf16.msra.mxu0 0
  %146 = vmatprep.mubr.bf16.mxu0 0
  %147 = vmatmul.mubr.bf16.gmra.mrb[0].mxu0 %v112
  %v148 = vpop.f32.mrb[0].mxu0
  %v149 = vadd.f32 %v97, %v148
  %v150 = vpop.f32.mrb[0].mxu0
  %v151 = vpop.f32.mrb[0].mxu0
  %v152 = vadd.f32 %v97, %v151
  %v153 = vpop.f32.mrb[0].mxu0
  %154 = vdwg.mxu0
  %v155 = vpack.c.bf16 %v152, %v149
  %v157 = vunpack.c.l.b16 %v155
  %v158 = vunpack.c.h.b16 %v155
  %v159 = vpack.c.b16 %v157, %v157
  %v160 = vpack.c.b16 %v158, %v158
  %vm163 = vcmask 257024
  %164 = vst.msk [vmem:[%s5] sm:$0xf] %vm163, %v159
  %165 = vst.msk [vmem:[%s5 + $0x4] sm:$0xf] %vm163, %v160
  %166 = vrot.lane.b32.xlu0 %v159, 96
  %v167 = vpop.permute.xlu0 %166
  %168 = vrot.lane.b32.xlu0 %v160, 96
  %v169 = vpop.permute.xlu0 %168
  %172 = vst.msk [vmem:[%s6] sm:$0xf] %vm163, %v167
  %173 = vst.msk [vmem:[%s6 + $0x4] sm:$0xf] %vm163, %v169
  %174 = vrot.lane.b32.xlu0 %v159, 64
  %v175 = vpop.permute.xlu0 %174
  %176 = vrot.lane.b32.xlu0 %v160, 64
  %v177 = vpop.permute.xlu0 %176
  %180 = vst.msk [vmem:[%s7] sm:$0xf] %vm163, %v175
  %181 = vst.msk [vmem:[%s7 + $0x4] sm:$0xf] %vm163, %v177
  // Predicated region
  $region22: #{decoder_layer.6} parent=0 // pred_check
    _
  $region23: #{decoder_layer.6} parent=0 // pred_check_branch
    %183 = sbr.rel (0) target = $region25
  $region24: #{decoder_layer.6} parent=0 // pred_region
    _
  $region25: #{decoder_layer.6} parent=0 // pred_fallthru
    _
  // Predicated region
  $region26: #{decoder_layer.6} parent=0 // pred_check
    _
  $region27: #{decoder_layer.6} parent=0 // pred_check_branch
    %185 = sbr.rel (0) target = $region29
  $region28: #{decoder_layer.6} parent=0 // pred_region
    _
  $region29: #{decoder_layer.6} parent=0 // pred_fallthru
    _
  // Predicated region
  $region30: #{decoder_layer.6} parent=0 // pred_check
    _
  $region31: #{decoder_layer.6} parent=0 // pred_check_branch
    %187 = sbr.rel (0) target = $region33
  $region32: #{decoder_layer.6} parent=0 // pred_region
    _
  $region33: #{decoder_layer.6} parent=0 // pred_fallthru
    _
  // Predicated region
  $region34: #{decoder_layer.6} parent=0 // pred_check
    _
  $region35: #{decoder_layer.6} parent=0 // pred_check_branch
    %189 = sbr.rel (0) target = $region37
  $region36: #{decoder_layer.6} parent=0 // pred_region
    _
  $region37: #{decoder_layer.6} parent=0 // pred_fallthru
    _
  // Predicated region
  $region38: #{decoder_layer.6} parent=0 // pred_check
    _
  $region39: #{decoder_layer.6} parent=0 // pred_check_branch
    %191 = sbr.rel (0) target = $region41
  $region40: #{decoder_layer.6} parent=0 // pred_region
    _
  $region41: #{decoder_layer.6} parent=0 // pred_fallthru
    _
  // Predicated region
  $region42: #{decoder_layer.6} parent=0 // pred_check
    _
  $region43: #{decoder_layer.6} parent=0 // pred_check_branch
    %193 = sbr.rel (0) target = $region45
  $region44: #{decoder_layer.6} parent=0 // pred_region
    _
  $region45: #{decoder_layer.6} parent=0 // pred_fallthru
    _

// kernel: decoder_layer.8
$region0: #{decoder_layer.8}
  #allocation0 [shape = 'u32[]', space=smem, size = 0x4, offset = 0x4, fixed_abs, tag = 'smem constant byte address 0x4 - core index']
  #allocation1 [shape = 'u32[144,128]{1,0:T(1,128)}', space=vmem, size = 0x12000, scoped, tag = 'internal scratch']
  %s0 = inlined_call_operand.vmem [shape: f32[16,32], index: 0, kind: input, shape index: {}]
  %s1 = inlined_call_operand.vmem [shape: f32[1,32], index: 1, kind: input, shape index: {}]
  %s2 = inlined_call_operand.vmem [shape: f32[1,32], index: 2, kind: input, shape index: {}]
  %s3 = inlined_call_operand.vmem [shape: bf16[32,32], index: 3, kind: input, shape index: {}]
  %s4 = inlined_call_operand.vmem [shape: f32[1,32], index: 4, kind: input, shape index: {}]
  %s5 = inlined_call_operand.vmem [shape: bf16[16,32], index: 5, kind: output, shape index: {}]
  %s6 = sld [smem:[#allocation0]]
  $region30: #{decoder_layer.8} parent=0
    _
  %s8 = ssub.s32 1, %s6
  %s9 = scalar_select 0, %s8, %s6
  // Predicated region
  $region2: #{decoder_layer.8} parent=0 // pred_check
    _
  $region3: #{decoder_layer.8} parent=0 // pred_check_branch
    %11 = sbr.rel (0) target = $region5
  $region4: #{decoder_layer.8} parent=0 // pred_region
    _
  $region5: #{decoder_layer.8} parent=0 // pred_fallthru
    _
  // Predicated region
  $region6: #{decoder_layer.8} parent=0 // pred_check
    _
  $region7: #{decoder_layer.8} parent=0 // pred_check_branch
    %13 = sbr.rel (0) target = $region9
  $region8: #{decoder_layer.8} parent=0 // pred_region
    _
  $region9: #{decoder_layer.8} parent=0 // pred_fallthru
    _
  // Predicated region
  $region10: #{decoder_layer.8} parent=0 // pred_check
    _
  $region11: #{decoder_layer.8} parent=0 // pred_check_branch
    %15 = sbr.rel (0) target = $region13
  $region12: #{decoder_layer.8} parent=0 // pred_region
    _
  $region13: #{decoder_layer.8} parent=0 // pred_fallthru
    _
  // Predicated region
  $region14: #{decoder_layer.8} parent=0 // pred_check
    _
  $region15: #{decoder_layer.8} parent=0 // pred_check_branch
    %17 = sbr.rel (0) target = $region17
  $region16: #{decoder_layer.8} parent=0 // pred_region
    _
  $region17: #{decoder_layer.8} parent=0 // pred_fallthru
    _
  // Predicated region
  $region18: #{decoder_layer.8} parent=0 // pred_check
    _
  $region19: #{decoder_layer.8} parent=0 // pred_check_branch
    %19 = sbr.rel (0) target = $region21
  $region20: #{decoder_layer.8} parent=0 // pred_region
    _
  $region21: #{decoder_layer.8} parent=0 // pred_fallthru
    _
  %v21 = vld [vmem:[%s0] sm:$0xff]
  %v22 = vld [vmem:[%s0 + $0x8] sm:$0xff]
  %v23 = vld [vmem:[%s1] sm:$0x1]
  %v24 = vld [vmem:[%s2] sm:$0x1]
  %vm25 = vcmask 261120
  %v26 = vsel %vm25, %v21, 0.0
  %27 = vadd.xlane.f32.xlu0 %v26
  %v28 = vpop.xlane.xlu0 %27
  %v29 = vsel %vm25, %v22, 0.0
  %30 = vadd.xlane.f32.xlu0 %v29
  %v31 = vpop.xlane.xlu0 %30
  %v32 = vrcp.pop 32.0
  %v33 = vmul.f32 %v28, %v32
  %v34 = vmul.f32 %v31, %v32
  %v35 = vsub.f32 %v21, %v33
  %v36 = vsub.f32 %v22, %v34
  %v37 = vmul.f32 %v35, %v35
  %v38 = vmul.f32 %v36, %v36
  %v39 = vsel %vm25, %v37, 0.0
  %40 = vadd.xlane.f32.xlu0 %v39
  %v41 = vpop.xlane.xlu0 %40
  %v42 = vsel %vm25, %v38, 0.0
  %43 = vadd.xlane.f32.xlu0 %v42
  %v44 = vpop.xlane.xlu0 %43
  %v45 = vrcp.pop 31.0
  %v46 = vmul.f32 %v41, %v45
  %v47 = vmul.f32 %v44, %v45
  %v49 = vlaneseq
  %v50 = vshrl.u32 %v49, 7
  %v51 = vsub.s32 0, %v50
  %v52 = vrot.slane %v23, %v51
  %v54 = vmul.f32 %v52, %v35
  %v55 = vmul.f32 %v52, %v36
  %v56 = vrsqrt.pop %v46
  %v57 = vmul.f32 %v46, %v56
  %vm58 = vcmp.eq.f32.partialorder %v46, inf
  %v59 = vsel %vm58, %v46, %v57
  %vm60 = vcmp.eq.f32.partialorder %v46, 0.0
  %v61 = vand.u32 %v46, 2147483648
  %v62 = vsel %vm60, %v61, %v59
  %v63 = vrsqrt.pop %v47
  %v64 = vmul.f32 %v47, %v63
  %vm65 = vcmp.eq.f32.partialorder %v47, inf
  %v66 = vsel %vm65, %v47, %v64
  %vm67 = vcmp.eq.f32.partialorder %v47, 0.0
  %v68 = vand.u32 %v47, 2147483648
  %v69 = vsel %vm67, %v68, %v66
  %v70 = vadd.f32 %v62, 1e-06
  %v71 = vadd.f32 %v69, 1e-06
  %v72 = vrcp.pop %v70
  %v73 = vmul.f32 %v54, %v72
  %v74 = vrcp.pop %v71
  %v75 = vmul.f32 %v55, %v74
  %v77 = vlaneseq
  %v78 = vshrl.u32 %v77, 7
  %v79 = vsub.s32 0, %v78
  %v80 = vrot.slane %v24, %v79
  %v82 = vadd.f32 %v73, %v80
  %v83 = vadd.f32 %v75, %v80
  %v84 = vpack.c.bf16 %v83, %v82
  %v85 = vld [vmem:[%s3] sm:$0xf]
  %v86 = vld [vmem:[%s3 + $0x4] sm:$0xf]
  %v87 = vld [vmem:[%s3 + $0x8] sm:$0xf]
  %v88 = vld [vmem:[%s3 + $0xc] sm:$0xf]
  %v89 = vld [vmem:[%s4] sm:$0x1]
  %v91 = vlaneseq
  %v92 = vshrl.u32 %v91, 7
  %v93 = vsub.s32 0, %v92
  %v94 = vrot.slane %v89, %v93
  %v100 = vunpack.c.l.b16 %v85
  %v101 = vunpack.c.l.b16 %v86
  %v102 = vunpack.c.l.b16 %v87
  %v103 = vunpack.c.l.b16 %v88
  %v104 = vpack.c.b16 %v101, %v100
  %v105 = vpack.c.b16 %v103, %v102
  %v109 = vsel %vm25, %v84, 0
  %111 = vmatprep.subr.bf16.mxu0 0
  %112 = vmatpush1.bf16.msra.mxu0 %v104
  %113 = vmatprep.subr.bf16.mxu0 0
  %114 = vmatpush1.bf16.msra.mxu0 %v105
  %115 = vmatprep.subr.bf16.mxu0 0
  %116 = vmatpush1.bf16.msra.mxu0 0
  %117 = vmatprep.subr.bf16.mxu0 0
  %118 = vmatpush1.bf16.msra.mxu0 0
  %119 = vmatprep.subr.bf16.mxu0 0
  %120 = vmatpush1.bf16.msra.mxu0 0
  %121 = vmatprep.subr.bf16.mxu0 0
  %122 = vmatpush1.bf16.msra.mxu0 0
  %123 = vmatprep.subr.bf16.mxu0 0
  %124 = vmatpush1.bf16.msra.mxu0 0
  %125 = vmatprep.subr.bf16.mxu0 0
  %126 = vmatpush1.bf16.msra.mxu0 0
  %127 = vmatprep.subr.bf16.mxu0 0
  %128 = vmatpush1.bf16.msra.mxu0 0
  %129 = vmatprep.subr.bf16.mxu0 0
  %130 = vmatpush1.bf16.msra.mxu0 0
  %131 = vmatprep.subr.bf16.mxu0 0
  %132 = vmatpush1.bf16.msra.mxu0 0
  %133 = vmatprep.subr.bf16.mxu0 0
  %134 = vmatpush1.bf16.msra.mxu0 0
  %135 = vmatprep.subr.bf16.mxu0 0
  %136 = vmatpush1.bf16.msra.mxu0 0
  %137 = vmatprep.subr.bf16.mxu0 0
  %138 = vmatpush1.bf16.msra.mxu0 0
  %139 = vmatprep.subr.bf16.mxu0 0
  %140 = vmatpush1.bf16.msra.mxu0 0
  %141 = vmatprep.subr.bf16.mxu0 0
  %142 = vmatpush1.bf16.msra.mxu0 0
  %143 = vmatprep.mubr.bf16.mxu0 0
  %144 = vmatmul.mubr.bf16.gmra.mrb[0].mxu0 %v109
  %v145 = vpop.f32.mrb[0].mxu0
  %v146 = vadd.f32 %v94, %v145
  %v147 = vpop.f32.mrb[0].mxu0
  %v148 = vpop.f32.mrb[0].mxu0
  %v149 = vadd.f32 %v94, %v148
  %v150 = vpop.f32.mrb[0].mxu0
  %151 = vdwg.mxu0
  %v152 = vpack.c.bf16 %v149, %v146
  %v154 = vunpack.c.l.b16 %v152
  %v155 = vunpack.c.h.b16 %v152
  %v156 = vpack.c.b16 %v154, %v154
  %v157 = vpack.c.b16 %v155, %v155
  %vm160 = vcmask 257024
  %161 = vst.msk [vmem:[%s5] sm:$0xf] %vm160, %v156
  %162 = vst.msk [vmem:[%s5 + $0x4] sm:$0xf] %vm160, %v157
  // Predicated region
  $region22: #{decoder_layer.8} parent=0 // pred_check
    _
  $region23: #{decoder_layer.8} parent=0 // pred_check_branch
    %164 = sbr.rel (0) target = $region25
  $region24: #{decoder_layer.8} parent=0 // pred_region
    _
  $region25: #{decoder_layer.8} parent=0 // pred_fallthru
    _
  // Predicated region
  $region26: #{decoder_layer.8} parent=0 // pred_check
    _
  $region27: #{decoder_layer.8} parent=0 // pred_check_branch
    %166 = sbr.rel (0) target = $region29
  $region28: #{decoder_layer.8} parent=0 // pred_region
    _
  $region29: #{decoder_layer.8} parent=0 // pred_fallthru
    _

// kernel: decoder_layer.7
$region0: #{decoder_layer.7}
  #allocation0 [shape = 'u32[]', space=smem, size = 0x4, offset = 0x4, fixed_abs, tag = 'smem constant byte address 0x4 - core index']
  #allocation1 [shape = 'u32[144,128]{1,0:T(1,128)}', space=vmem, size = 0x12000, scoped, tag = 'internal scratch']
  %s0 = inlined_call_operand.vmem [shape: bf16[2,8,32], index: 0, kind: input, shape index: {}]
  %s1 = inlined_call_operand.vmem [shape: bf16[2,8,32], index: 1, kind: input, shape index: {}]
  %s2 = inlined_call_operand.vmem [shape: bf16[2,8,32], index: 2, kind: input, shape index: {}]
  %s3 = inlined_call_operand.vmem [shape: f32[8,8], index: 3, kind: input, shape index: {}]
  %s4 = inlined_call_operand.vmem [shape: bf16[32,32], index: 4, kind: input, shape index: {}]
  %s5 = inlined_call_operand.vmem [shape: f32[1,32], index: 5, kind: input, shape index: {}]
  %s6 = inlined_call_operand.vmem [shape: f32[2,8,32], index: 6, kind: input, shape index: {}, may-alias: {6,7}]
  %s7 = inlined_call_operand.vmem [shape: f32[2,8,32], index: 7, kind: output, shape index: {}, may-alias: {6,7}]
  %s8 = sld [smem:[#allocation0]]
  $region61: #{decoder_layer.7} parent=0
    _
  %s10 = ssub.s32 1, %s8
  %s11 = scalar_select 0, %s10, %s8
  loop: start=0, step=1, limit=4
  $region2: #{decoder_layer.7} parent=0 // loop_pre_header
    _
  $region3: #{decoder_layer.7} parent=0 // loop_header
    %s13 = sphi 0, %s17
    %p14 = scmp.ge.s32.totalorder %s13, 4
    %s20 = sphi 0, %s32
    %s21 = sphi 0, %s28
    %s22 = sphi 0, %s20
    %s23 = sphi 0, %s21
    %s24 = sphi 0, %s22
    %s25 = sphi 0, %s23
    %s37 = sphi 0, %s39
    %s40 = sphi 0, %s37
    %s41 = sphi 0, %s40
    %s57 = sphi 0, %s41
    %s63 = sphi 0, %s65
    %s66 = sphi 0, %s63
    %s67 = sphi 0, %s66
    %s83 = sphi 0, %s67
    %s89 = sphi 0, %s91
    %s92 = sphi 0, %s89
    %s93 = sphi 0, %s92
    %s109 = sphi 0, %s93
    %s115 = sphi 0, %s117
    %s118 = sphi 0, %s115
    %s119 = sphi 0, %s118
    %s135 = sphi 0, %s119
    %s139 = sphi 0, %s139
    %s141 = sphi 0, %s139
    %s142 = sphi 0, %s141
    %s156 = sphi 0, %s142
    %s160 = sphi 0, %s160
    %s162 = sphi 0, %s160
    %s163 = sphi 0, %s162
    %s177 = sphi 0, %s163
    %s185 = sphi 0, %s187
    %s188 = sphi 0, %s185
    %s189 = sphi 0, %s188
    %s205 = sphi 0, %s189
    %s213 = sphi 0, %s215
    %s216 = sphi 0, %s213
    %s217 = sphi 0, %s216
    %s233 = sphi 0, %s217
  $region4: #{decoder_layer.7} parent=0 // loop_header_branch
    %16 = sbr.rel (%p14) target = $region8
  $region5: #{decoder_layer.7} parent=0 // loop_body
    %s18 = ssub.s32 %s13, 1
    %s19 = ssub.s32 %s13, 2
    %s26 = sadd.s32 1, %s21
    %p27 = scmp.ge.s32.totalorder %s26, 1
    %s28 = scalar_select %p27, 0, %s26
    %s29 = sadd.s32 1, %s20
    %s30 = scalar_select %p27, %s29, %s20
    %p31 = scmp.ge.s32.totalorder %s30, 2
    %s32 = scalar_select %p31, 0, %s30
    %s33 = ssub.s32 %s20, %s32
    %s34 = ssub.s32 %s21, %s28
    %s35 = sor.u32 %s33, %s34
    %p36 = scmp.eq.s32.totalorder %s35, 0
    %s38 = sadd.s32 %s37, 1
    %s39 = scalar_select %p36, %s37, %s38
    %p42 = pneg %p36
    %p43 = scmp.eq.s32.totalorder %s13, 1
    %p44 = por %p42, %p43
    %p45 = scmp.ne.s32.totalorder %s37, %s40
    %p46 = scmp.eq.s32.totalorder %s13, 0
    %p47 = por %p45, %p46
    %p48 = scmp.ne.s32.totalorder %s37, %s40
    %p49 = scmp.eq.s32.totalorder %s18, 1
    %p50 = por %p48, %p49
    %p51 = scmp.ne.s32.totalorder %s40, %s41
    %p52 = scmp.eq.s32.totalorder %s18, 0
    %p53 = por %p51, %p52
    %p54 = scmp.ne.s32.totalorder %s40, %s41
    %p55 = scmp.eq.s32.totalorder %s19, 1
    %p56 = por %p54, %p55
    %p58 = scmp.ne.s32.totalorder %s41, %s57
    %p59 = scmp.eq.s32.totalorder %s19, 0
    %p60 = por %p58, %p59
    %s61 = ssub.s32 %s20, %s32
    %p62 = scmp.eq.s32.totalorder %s61, 0
    %s64 = sadd.s32 %s63, 1
    %s65 = scalar_select %p62, %s63, %s64
    %p68 = pneg %p62
    %p69 = scmp.eq.s32.totalorder %s13, 1
    %p70 = por %p68, %p69
    %p71 = scmp.ne.s32.totalorder %s63, %s66
    %p72 = scmp.eq.s32.totalorder %s13, 0
    %p73 = por %p71, %p72
    %p74 = scmp.ne.s32.totalorder %s63, %s66
    %p75 = scmp.eq.s32.totalorder %s18, 1
    %p76 = por %p74, %p75
    %p77 = scmp.ne.s32.totalorder %s66, %s67
    %p78 = scmp.eq.s32.totalorder %s18, 0
    %p79 = por %p77, %p78
    %p80 = scmp.ne.s32.totalorder %s66, %s67
    %p81 = scmp.eq.s32.totalorder %s19, 1
    %p82 = por %p80, %p81
    %p84 = scmp.ne.s32.totalorder %s67, %s83
    %p85 = scmp.eq.s32.totalorder %s19, 0
    %p86 = por %p84, %p85
    %s87 = ssub.s32 %s20, %s32
    %p88 = scmp.eq.s32.totalorder %s87, 0
    %s90 = sadd.s32 %s89, 1
    %s91 = scalar_select %p88, %s89, %s90
    %p94 = pneg %p88
    %p95 = scmp.eq.s32.totalorder %s13, 1
    %p96 = por %p94, %p95
    %p97 = scmp.ne.s32.totalorder %s89, %s92
    %p98 = scmp.eq.s32.totalorder %s13, 0
    %p99 = por %p97, %p98
    %p100 = scmp.ne.s32.totalorder %s89, %s92
    %p101 = scmp.eq.s32.totalorder %s18, 1
    %p102 = por %p100, %p101
    %p103 = scmp.ne.s32.totalorder %s92, %s93
    %p104 = scmp.eq.s32.totalorder %s18, 0
    %p105 = por %p103, %p104
    %p106 = scmp.ne.s32.totalorder %s92, %s93
    %p107 = scmp.eq.s32.totalorder %s19, 1
    %p108 = por %p106, %p107
    %p110 = scmp.ne.s32.totalorder %s93, %s109
    %p111 = scmp.eq.s32.totalorder %s19, 0
    %p112 = por %p110, %p111
    %s113 = ssub.s32 %s21, %s28
    %p114 = scmp.eq.s32.totalorder %s113, 0
    %s116 = sadd.s32 %s115, 1
    %s117 = scalar_select %p114, %s115, %s116
    %p120 = pneg %p114
    %p121 = scmp.eq.s32.totalorder %s13, 1
    %p122 = por %p120, %p121
    %p123 = scmp.ne.s32.totalorder %s115, %s118
    %p124 = scmp.eq.s32.totalorder %s13, 0
    %p125 = por %p123, %p124
    %p126 = scmp.ne.s32.totalorder %s115, %s118
    %p127 = scmp.eq.s32.totalorder %s18, 1
    %p128 = por %p126, %p127
    %p129 = scmp.ne.s32.totalorder %s118, %s119
    %p130 = scmp.eq.s32.totalorder %s18, 0
    %p131 = por %p129, %p130
    %p132 = scmp.ne.s32.totalorder %s118, %s119
    %p133 = scmp.eq.s32.totalorder %s19, 1
    %p134 = por %p132, %p133
    %p136 = scmp.ne.s32.totalorder %s119, %s135
    %p137 = scmp.eq.s32.totalorder %s19, 0
    %p138 = por %p136, %p137
    %s140 = sadd.s32 %s139, 1
    %p143 = scmp.eq.s32.totalorder %s13, 1
    %p144 = scmp.ne.s32.totalorder %s139, %s141
    %p145 = scmp.eq.s32.totalorder %s13, 0
    %p146 = por %p144, %p145
    %p147 = scmp.ne.s32.totalorder %s139, %s141
    %p148 = scmp.eq.s32.totalorder %s18, 1
    %p149 = por %p147, %p148
    %p150 = scmp.ne.s32.totalorder %s141, %s142
    %p151 = scmp.eq.s32.totalorder %s18, 0
    %p152 = por %p150, %p151
    %p153 = scmp.ne.s32.totalorder %s141, %s142
    %p154 = scmp.eq.s32.totalorder %s19, 1
    %p155 = por %p153, %p154
    %p157 = scmp.ne.s32.totalorder %s142, %s156
    %p158 = scmp.eq.s32.totalorder %s19, 0
    %p159 = por %p157, %p158
    %s161 = sadd.s32 %s160, 1
    %p164 = scmp.eq.s32.totalorder %s13, 1
    %p165 = scmp.ne.s32.totalorder %s160, %s162
    %p166 = scmp.eq.s32.totalorder %s13, 0
    %p167 = por %p165, %p166
    %p168 = scmp.ne.s32.totalorder %s160, %s162
    %p169 = scmp.eq.s32.totalorder %s18, 1
    %p170 = por %p168, %p169
    %p171 = scmp.ne.s32.totalorder %s162, %s163
    %p172 = scmp.eq.s32.totalorder %s18, 0
    %p173 = por %p171, %p172
    %p174 = scmp.ne.s32.totalorder %s162, %s163
    %p175 = scmp.eq.s32.totalorder %s19, 1
    %p176 = por %p174, %p175
    %p178 = scmp.ne.s32.totalorder %s163, %s177
    %p179 = scmp.eq.s32.totalorder %s19, 0
    %p180 = por %p178, %p179
    %s181 = ssub.s32 %s20, %s32
    %s182 = ssub.s32 %s21, %s28
    %s183 = sor.u32 %s181, %s182
    %p184 = scmp.eq.s32.totalorder %s183, 0
    %s186 = sadd.s32 %s185, 1
    %s187 = scalar_select %p184, %s185, %s186
    %p190 = pneg %p184
    %p191 = scmp.eq.s32.totalorder %s13, 1
    %p192 = por %p190, %p191
    %p193 = scmp.ne.s32.totalorder %s185, %s188
    %p194 = scmp.eq.s32.totalorder %s13, 0
    %p195 = por %p193, %p194
    %p196 = scmp.ne.s32.totalorder %s185, %s188
    %p197 = scmp.eq.s32.totalorder %s18, 1
    %p198 = por %p196, %p197
    %p199 = scmp.ne.s32.totalorder %s188, %s189
    %p200 = scmp.eq.s32.totalorder %s18, 0
    %p201 = por %p199, %p200
    %p202 = scmp.ne.s32.totalorder %s188, %s189
    %p203 = scmp.eq.s32.totalorder %s19, 1
    %p204 = por %p202, %p203
    %p206 = scmp.ne.s32.totalorder %s189, %s205
    %p207 = scmp.eq.s32.totalorder %s19, 0
    %p208 = por %p206, %p207
    %s209 = ssub.s32 %s20, %s32
    %s210 = ssub.s32 %s21, %s28
    %s211 = sor.u32 %s209, %s210
    %p212 = scmp.eq.s32.totalorder %s211, 0
    %s214 = sadd.s32 %s213, 1
    %s215 = scalar_select %p212, %s213, %s214
    %p218 = pneg %p212
    %p219 = scmp.eq.s32.totalorder %s13, 1
    %p220 = por %p218, %p219
    %p221 = scmp.ne.s32.totalorder %s213, %s216
    %p222 = scmp.eq.s32.totalorder %s13, 0
    %p223 = por %p221, %p222
    %p224 = scmp.ne.s32.totalorder %s213, %s216
    %p225 = scmp.eq.s32.totalorder %s18, 1
    %p226 = por %p224, %p225
    %p227 = scmp.ne.s32.totalorder %s216, %s217
    %p228 = scmp.eq.s32.totalorder %s18, 0
    %p229 = por %p227, %p228
    %p230 = scmp.ne.s32.totalorder %s216, %s217
    %p231 = scmp.eq.s32.totalorder %s19, 1
    %p232 = por %p230, %p231
    %p234 = scmp.ne.s32.totalorder %s217, %s233
    %p235 = scmp.eq.s32.totalorder %s19, 0
    %p236 = por %p234, %p235
    %p237 = scmp.le.s32.totalorder 1, %s13
    %p238 = scmp.lt.s32.totalorder %s13, 3
    %p239 = pnand %p237, %p238
    %p240 = pneg %p239
    // Predicated region
    $region9: #{decoder_layer.7} parent=5 // pred_check
      _
    $region10: #{decoder_layer.7} parent=5 // pred_check_branch
      %242 = sbr.rel (%p239) target = $region12
    $region11: #{decoder_layer.7} parent=5 // pred_region
      %s243 = ssub.s32 %s13, 1
      // Predicated region
      $region13: #{decoder_layer.7} parent=11 // pred_check
        %p244 = pneg %p131
      $region14: #{decoder_layer.7} parent=11 // pred_check_branch
        %246 = sbr.rel (%p244) target = $region16
      $region15: #{decoder_layer.7} parent=11 // pred_region
        %p247 = scmp.lt.s32.totalorder %s23, 0
        %s248 = scalar_select %p247, %s23, 0
        %s249 = smul.addr %s248, 8
        %s250 = scalar_lea.vmem %s3, %s249
      $region16: #{decoder_layer.7} parent=11 // pred_fallthru
        _
      // Predicated region
      $region17: #{decoder_layer.7} parent=11 // pred_check
        %p251 = pneg %p152
      $region18: #{decoder_layer.7} parent=11 // pred_check_branch
        %253 = sbr.rel (%p251) target = $region20
      $region19: #{decoder_layer.7} parent=11 // pred_region
        _
      $region20: #{decoder_layer.7} parent=11 // pred_fallthru
        _
      // Predicated region
      $region21: #{decoder_layer.7} parent=11 // pred_check
        %p254 = pneg %p173
      $region22: #{decoder_layer.7} parent=11 // pred_check_branch
        %256 = sbr.rel (%p254) target = $region24
      $region23: #{decoder_layer.7} parent=11 // pred_region
        _
      $region24: #{decoder_layer.7} parent=11 // pred_fallthru
        _
    $region12: #{decoder_layer.7} parent=5 // pred_fallthru
      _
    %p257 = scmp.lt.s32.totalorder %s13, 2
    // Predicated region
    $region25: #{decoder_layer.7} parent=5 // pred_check
      %p258 = pneg %p257
    $region26: #{decoder_layer.7} parent=5 // pred_check_branch
      %260 = sbr.rel (%p258) target = $region28
    $region27: #{decoder_layer.7} parent=5 // pred_region
      // Predicated region
      $region29: #{decoder_layer.7} parent=27 // pred_check
        %p261 = pneg %p47
      $region30: #{decoder_layer.7} parent=27 // pred_check_branch
        %263 = sbr.rel (%p261) target = $region32
      $region31: #{decoder_layer.7} parent=27 // pred_region
        %p264 = scmp.lt.s32.totalorder %s20, 1
        %s265 = scalar_select %p264, %s20, 1
        %p266 = scmp.lt.s32.totalorder %s21, 0
        %s267 = scalar_select %p266, %s21, 0
        %s268 = sadd.s32 %s267, %s265
        %s269 = smul.addr %s268, 4
        %s270 = scalar_lea.vmem %s0, %s269
      $region32: #{decoder_layer.7} parent=27 // pred_fallthru
        _
      // Predicated region
      $region33: #{decoder_layer.7} parent=27 // pred_check
        %p271 = pneg %p73
      $region34: #{decoder_layer.7} parent=27 // pred_check_branch
        %273 = sbr.rel (%p271) target = $region36
      $region35: #{decoder_layer.7} parent=27 // pred_region
        %p274 = scmp.lt.s32.totalorder %s20, 1
        %s275 = scalar_select %p274, %s20, 1
        %s276 = smul.addr %s275, 4
        %s277 = scalar_lea.vmem %s1, %s276
      $region36: #{decoder_layer.7} parent=27 // pred_fallthru
        _
      // Predicated region
      $region37: #{decoder_layer.7} parent=27 // pred_check
        %p278 = pneg %p99
      $region38: #{decoder_layer.7} parent=27 // pred_check_branch
        %280 = sbr.rel (%p278) target = $region40
      $region39: #{decoder_layer.7} parent=27 // pred_region
        %p281 = scmp.lt.s32.totalorder %s20, 1
        %s282 = scalar_select %p281, %s20, 1
        %s283 = smul.addr %s282, 4
        %s284 = scalar_lea.vmem %s2, %s283
      $region40: #{decoder_layer.7} parent=27 // pred_fallthru
        _
      // Predicated region
      $region41: #{decoder_layer.7} parent=27 // pred_check
        %p285 = pneg %p195
      $region42: #{decoder_layer.7} parent=27 // pred_check_branch
        %287 = sbr.rel (%p285) target = $region44
      $region43: #{decoder_layer.7} parent=27 // pred_region
        %p288 = scmp.lt.s32.totalorder %s20, 1
        %s289 = scalar_select %p288, %s20, 1
        %p290 = scmp.lt.s32.totalorder %s21, 0
        %s291 = scalar_select %p290, %s21, 0
        %s292 = sadd.s32 %s291, %s289
        %s293 = smul.addr %s292, 8
        %s294 = scalar_lea.vmem %s6, %s293
      $region44: #{decoder_layer.7} parent=27 // pred_fallthru
        _
    $region28: #{decoder_layer.7} parent=5 // pred_fallthru
      _
    %p295 = scmp.le.s32.totalorder 1, %s13
    %p296 = scmp.lt.s32.totalorder %s13, 3
    %p297 = pnand %p295, %p296
    %p298 = pneg %p297
    // Predicated region
    $region45: #{decoder_layer.7} parent=5 // pred_check
      _
    $region46: #{decoder_layer.7} parent=5 // pred_check_branch
      %300 = sbr.rel (%p297) target = $region48
    $region47: #{decoder_layer.7} parent=5 // pred_region
      %s301 = ssub.s32 %s13, 1
      %p302 = scmp.lt.s32.totalorder %s22, 1
      %s303 = scalar_select %p302, %s22, 1
      %p304 = scmp.lt.s32.totalorder %s23, 0
      %s305 = scalar_select %p304, %s23, 0
      %s306 = sadd.s32 %s305, %s303
      %s307 = smul.addr %s306, 4
      %s308 = scalar_lea.vmem %s0, %s307
      %p309 = pneg %p53
      %p310 = pneg %p50
      %p311 = scmp.lt.s32.totalorder %s22, 1
      %s312 = scalar_select %p311, %s22, 1
      %s313 = smul.addr %s312, 4
      %s314 = scalar_lea.vmem %s1, %s313
      %p315 = pneg %p79
      %p316 = pneg %p76
      %p317 = scmp.lt.s32.totalorder %s22, 1
      %s318 = scalar_select %p317, %s22, 1
      %s319 = smul.addr %s318, 4
      %s320 = scalar_lea.vmem %s2, %s319
      %p321 = pneg %p105
      %p322 = pneg %p102
      %p323 = scmp.lt.s32.totalorder %s23, 0
      %s324 = scalar_select %p323, %s23, 0
      %s325 = smul.addr %s324, 8
      %s326 = scalar_lea.vmem %s3, %s325
      %p327 = pneg %p131
      %p328 = pneg %p128
      %p329 = pneg %p152
      %p330 = pneg %p149
      %p331 = pneg %p173
      %p332 = pneg %p170
      %p333 = scmp.lt.s32.totalorder %s22, 1
      %s334 = scalar_select %p333, %s22, 1
      %p335 = scmp.lt.s32.totalorder %s23, 0
      %s336 = scalar_select %p335, %s23, 0
      %s337 = sadd.s32 %s336, %s334
      %s338 = smul.addr %s337, 8
      %s339 = scalar_lea.vmem %s6, %s338
      %p340 = pneg %p201
      %p341 = pneg %p198
      %p342 = pneg %p229
      %p343 = pneg %p226
      %p344 = scmp.lt.s32.totalorder %s22, 1
      %s345 = scalar_select %p344, %s22, 1
      %p346 = scmp.lt.s32.totalorder %s23, 0
      %s347 = scalar_select %p346, %s23, 0
      %s348 = sadd.s32 %s347, %s345
      %s349 = smul.addr %s348, 8
      %s350 = scalar_lea.vmem %s7, %s349
      %p351 = scmp.lt.s32.totalorder %s22, 1
      %s352 = scalar_select %p351, %s22, 1
      %p353 = scmp.lt.s32.totalorder %s23, 0
      %s354 = scalar_select %p353, %s23, 0
      %s355 = sadd.s32 %s354, %s352
      %s356 = smul.addr %s355, 4
      %s357 = scalar_lea.vmem %s0, %s356
      %p358 = scmp.lt.s32.totalorder %s22, 1
      %s359 = scalar_select %p358, %s22, 1
      %s360 = smul.addr %s359, 4
      %s361 = scalar_lea.vmem %s1, %s360
      %p362 = scmp.lt.s32.totalorder %s22, 1
      %s363 = scalar_select %p362, %s22, 1
      %s364 = smul.addr %s363, 4
      %s365 = scalar_lea.vmem %s2, %s364
      %p366 = scmp.lt.s32.totalorder %s23, 0
      %s367 = scalar_select %p366, %s23, 0
      %s368 = smul.addr %s367, 8
      %s369 = scalar_lea.vmem %s3, %s368
      %p370 = scmp.lt.s32.totalorder %s22, 1
      %s371 = scalar_select %p370, %s22, 1
      %p372 = scmp.lt.s32.totalorder %s23, 0
      %s373 = scalar_select %p372, %s23, 0
      %s374 = sadd.s32 %s373, %s371
      %s375 = smul.addr %s374, 8
      %s376 = scalar_lea.vmem %s6, %s375
      %p377 = scmp.lt.s32.totalorder %s22, 1
      %s378 = scalar_select %p377, %s22, 1
      %p379 = scmp.lt.s32.totalorder %s23, 0
      %s380 = scalar_select %p379, %s23, 0
      %s381 = sadd.s32 %s380, %s378
      %s382 = smul.addr %s381, 8
      %s383 = scalar_lea.vmem %s7, %s382
      %v385 = vld [vmem:[%s357] sm:$0xf]
      %v386 = vld [vmem:[%s361] sm:$0xf]
      %v387 = vld [vmem:[%s365] sm:$0xf]
      %v388 = vld [vmem:[%s369] sm:$0xff]
      %vm389 = vcmp.gt.f32.partialorder %v388, 0.0
      %vm390 = vcmask 64512
      %v392 = vsel %vm390, %v385, 0
      %v395 = vsel %vm390, %v386, 0
      %397 = vmatprep.subr.bf16.mxu0 0
      %398 = vmatpush1.bf16.xpose.msra.mxu0 %v395
      %399 = vmatprep.subr.bf16.mxu0 0
      %400 = vmatpush1.bf16.xpose.msra.mxu0 0
      %401 = vmatprep.subr.bf16.mxu0 0
      %402 = vmatpush1.bf16.xpose.msra.mxu0 0
      %403 = vmatprep.subr.bf16.mxu0 0
      %404 = vmatpush1.bf16.xpose.msra.mxu0 0
      %405 = vmatprep.subr.bf16.mxu0 0
      %406 = vmatpush1.bf16.xpose.msra.mxu0 0
      %407 = vmatprep.subr.bf16.mxu0 0
      %408 = vmatpush1.bf16.xpose.msra.mxu0 0
      %409 = vmatprep.subr.bf16.mxu0 0
      %410 = vmatpush1.bf16.xpose.msra.mxu0 0
      %411 = vmatprep.subr.bf16.mxu0 0
      %412 = vmatpush1.bf16.xpose.msra.mxu0 0
      %413 = vmatprep.subr.bf16.mxu0 0
      %414 = vmatpush1.bf16.xpose.msra.mxu0 0
      %415 = vmatprep.subr.bf16.mxu0 0
      %416 = vmatpush1.bf16.xpose.msra.mxu0 0
      %417 = vmatprep.subr.bf16.mxu0 0
      %418 = vmatpush1.bf16.xpose.msra.mxu0 0
      %419 = vmatprep.subr.bf16.mxu0 0
      %420 = vmatpush1.bf16.xpose.msra.mxu0 0
      %421 = vmatprep.subr.bf16.mxu0 0
      %422 = vmatpush1.bf16.xpose.msra.mxu0 0
      %423 = vmatprep.subr.bf16.mxu0 0
      %424 = vmatpush1.bf16.xpose.msra.mxu0 0
      %425 = vmatprep.subr.bf16.mxu0 0
      %426 = vmatpush1.bf16.xpose.msra.mxu0 0
      %427 = vmatprep.subr.bf16.mxu0 0
      %428 = vmatpush1.bf16.xpose.msra.mxu0 0
      %429 = vmatprep.mubr.bf16.mxu0 0
      %430 = vmatmul.mubr.bf16.gmra.mrb[0].mxu0 %v392
      %v431 = vpop.f32.mrb[0].mxu0
      %v432 = vadd.f32 0.0, %v431
      %v433 = vpop.f32.mrb[0].mxu0
      %v434 = vpop.f32.mrb[0].mxu0
      %v435 = vpop.f32.mrb[0].mxu0
      %436 = vdwg.mxu0
      %v437 = vmul.f32 %v432, 0.35355338
      %v438 = vsel %vm389, %v437, -1e+09
      %v439 = vsel %vm390, %v438, -inf
      %440 = vmax.xlane.f32.xlu0 %v439
      %v441 = vpop.xlane.xlu0 %440
      %v442 = vsub.f32 %v438, %v441
      %v443 = vmul.f32 %v442, 1.442695
      %v444 = vpow.pop %v443
      %v445 = vsel %vm390, %v444, 0.0
      %446 = vadd.xlane.f32.xlu0 %v445
      %v447 = vpop.xlane.xlu0 %446
      %v448 = vrcp.pop %v447
      %v449 = vmul.f32 %v444, %v448
      %v450 = vpack.c.bf16 %v449, %v449
      %v452 = vsel %vm390, %v450, 0
      %vm454 = vcmask 1043456
      %v456 = vsel %vm454, %v387, 0
      %458 = vmatprep.subr.bf16.mxu0 0
      %459 = vmatpush1.bf16.msra.mxu0 %v456
      %460 = vmatprep.subr.bf16.mxu0 0
      %461 = vmatpush1.bf16.msra.mxu0 0
      %462 = vmatprep.subr.bf16.mxu0 0
      %463 = vmatpush1.bf16.msra.mxu0 0
      %464 = vmatprep.subr.bf16.mxu0 0
      %465 = vmatpush1.bf16.msra.mxu0 0
      %466 = vmatprep.subr.bf16.mxu0 0
      %467 = vmatpush1.bf16.msra.mxu0 0
      %468 = vmatprep.subr.bf16.mxu0 0
      %469 = vmatpush1.bf16.msra.mxu0 0
      %470 = vmatprep.subr.bf16.mxu0 0
      %471 = vmatpush1.bf16.msra.mxu0 0
      %472 = vmatprep.subr.bf16.mxu0 0
      %473 = vmatpush1.bf16.msra.mxu0 0
      %474 = vmatprep.subr.bf16.mxu0 0
      %475 = vmatpush1.bf16.msra.mxu0 0
      %476 = vmatprep.subr.bf16.mxu0 0
      %477 = vmatpush1.bf16.msra.mxu0 0
      %478 = vmatprep.subr.bf16.mxu0 0
      %479 = vmatpush1.bf16.msra.mxu0 0
      %480 = vmatprep.subr.bf16.mxu0 0
      %481 = vmatpush1.bf16.msra.mxu0 0
      %482 = vmatprep.subr.bf16.mxu0 0
      %483 = vmatpush1.bf16.msra.mxu0 0
      %484 = vmatprep.subr.bf16.mxu0 0
      %485 = vmatpush1.bf16.msra.mxu0 0
      %486 = vmatprep.subr.bf16.mxu0 0
      %487 = vmatpush1.bf16.msra.mxu0 0
      %488 = vmatprep.subr.bf16.mxu0 0
      %489 = vmatpush1.bf16.msra.mxu0 0
      %490 = vmatprep.mubr.bf16.mxu0 0
      %491 = vmatmul.mubr.bf16.gmra.mrb[0].mxu0 %v452
      %v492 = vpop.f32.mrb[0].mxu0
      %v493 = vadd.f32 0.0, %v492
      %v494 = vpop.f32.mrb[0].mxu0
      %v495 = vpop.f32.mrb[0].mxu0
      %v496 = vpop.f32.mrb[0].mxu0
      %497 = vdwg.mxu0
      %v499 = vunpack.c.l.b16 %v385
      %v500 = vpack.c.b16 %v499, %v499
      %501 = vrot.lane.b32.xlu0 %v500, 120
      %v502 = vpop.permute.xlu0 %501
      %v504 = vunpack.c.l.b16 %v386
      %v505 = vpack.c.b16 %v504, %v504
      %506 = vrot.lane.b32.xlu0 %v505, 120
      %v507 = vpop.permute.xlu0 %506
      %v509 = vsel %vm390, %v502, 0
      %v512 = vsel %vm390, %v507, 0
      %514 = vmatprep.subr.bf16.mxu0 0
      %515 = vmatpush1.bf16.xpose.msra.mxu0 %v512
      %516 = vmatprep.subr.bf16.mxu0 0
      %517 = vmatpush1.bf16.xpose.msra.mxu0 0
      %518 = vmatprep.subr.bf16.mxu0 0
      %519 = vmatpush1.bf16.xpose.msra.mxu0 0
      %520 = vmatprep.subr.bf16.mxu0 0
      %521 = vmatpush1.bf16.xpose.msra.mxu0 0
      %522 = vmatprep.subr.bf16.mxu0 0
      %523 = vmatpush1.bf16.xpose.msra.mxu0 0
      %524 = vmatprep.subr.bf16.mxu0 0
      %525 = vmatpush1.bf16.xpose.msra.mxu0 0
      %526 = vmatprep.subr.bf16.mxu0 0
      %527 = vmatpush1.bf16.xpose.msra.mxu0 0
      %528 = vmatprep.subr.bf16.mxu0 0
      %529 = vmatpush1.bf16.xpose.msra.mxu0 0
      %530 = vmatprep.subr.bf16.mxu0 0
      %531 = vmatpush1.bf16.xpose.msra.mxu0 0
      %532 = vmatprep.subr.bf16.mxu0 0
      %533 = vmatpush1.bf16.xpose.msra.mxu0 0
      %534 = vmatprep.subr.bf16.mxu0 0
      %535 = vmatpush1.bf16.xpose.msra.mxu0 0
      %536 = vmatprep.subr.bf16.mxu0 0
      %537 = vmatpush1.bf16.xpose.msra.mxu0 0
      %538 = vmatprep.subr.bf16.mxu0 0
      %539 = vmatpush1.bf16.xpose.msra.mxu0 0
      %540 = vmatprep.subr.bf16.mxu0 0
      %541 = vmatpush1.bf16.xpose.msra.mxu0 0
      %542 = vmatprep.subr.bf16.mxu0 0
      %543 = vmatpush1.bf16.xpose.msra.mxu0 0
      %544 = vmatprep.subr.bf16.mxu0 0
      %545 = vmatpush1.bf16.xpose.msra.mxu0 0
      %546 = vmatprep.mubr.bf16.mxu0 0
      %547 = vmatmul.mubr.bf16.gmra.mrb[0].mxu0 %v509
      %v548 = vpop.f32.mrb[0].mxu0
      %v549 = vadd.f32 0.0, %v548
      %v550 = vpop.f32.mrb[0].mxu0
      %v551 = vpop.f32.mrb[0].mxu0
      %v552 = vpop.f32.mrb[0].mxu0
      %553 = vdwg.mxu0
      %v554 = vmul.f32 %v549, 0.35355338
      %v555 = vsel %vm389, %v554, -1e+09
      %v556 = vsel %vm390, %v555, -inf
      %557 = vmax.xlane.f32.xlu0 %v556
      %v558 = vpop.xlane.xlu0 %557
      %v559 = vsub.f32 %v555, %v558
      %v560 = vmul.f32 %v559, 1.442695
      %v561 = vpow.pop %v560
      %v562 = vsel %vm390, %v561, 0.0
      %563 = vadd.xlane.f32.xlu0 %v562
      %v564 = vpop.xlane.xlu0 %563
      %v565 = vrcp.pop %v564
      %v566 = vmul.f32 %v561, %v565
      %v567 = vpack.c.bf16 %v566, %v566
      %v569 = vunpack.c.l.b16 %v387
      %v570 = vpack.c.b16 %v569, %v569
      %571 = vrot.lane.b32.xlu0 %v570, 120
      %v572 = vpop.permute.xlu0 %571
      %v574 = vsel %vm390, %v567, 0
      %v577 = vsel %vm454, %v572, 0
      %579 = vmatprep.subr.bf16.mxu0 0
      %580 = vmatpush1.bf16.msra.mxu0 %v577
      %581 = vmatprep.subr.bf16.mxu0 0
      %582 = vmatpush1.bf16.msra.mxu0 0
      %583 = vmatprep.subr.bf16.mxu0 0
      %584 = vmatpush1.bf16.msra.mxu0 0
      %585 = vmatprep.subr.bf16.mxu0 0
      %586 = vmatpush1.bf16.msra.mxu0 0
      %587 = vmatprep.subr.bf16.mxu0 0
      %588 = vmatpush1.bf16.msra.mxu0 0
      %589 = vmatprep.subr.bf16.mxu0 0
      %590 = vmatpush1.bf16.msra.mxu0 0
      %591 = vmatprep.subr.bf16.mxu0 0
      %592 = vmatpush1.bf16.msra.mxu0 0
      %593 = vmatprep.subr.bf16.mxu0 0
      %594 = vmatpush1.bf16.msra.mxu0 0
      %595 = vmatprep.subr.bf16.mxu0 0
      %596 = vmatpush1.bf16.msra.mxu0 0
      %597 = vmatprep.subr.bf16.mxu0 0
      %598 = vmatpush1.bf16.msra.mxu0 0
      %599 = vmatprep.subr.bf16.mxu0 0
      %600 = vmatpush1.bf16.msra.mxu0 0
      %601 = vmatprep.subr.bf16.mxu0 0
      %602 = vmatpush1.bf16.msra.mxu0 0
      %603 = vmatprep.subr.bf16.mxu0 0
      %604 = vmatpush1.bf16.msra.mxu0 0
      %605 = vmatprep.subr.bf16.mxu0 0
      %606 = vmatpush1.bf16.msra.mxu0 0
      %607 = vmatprep.subr.bf16.mxu0 0
      %608 = vmatpush1.bf16.msra.mxu0 0
      %609 = vmatprep.subr.bf16.mxu0 0
      %610 = vmatpush1.bf16.msra.mxu0 0
      %611 = vmatprep.mubr.bf16.mxu0 0
      %612 = vmatmul.mubr.bf16.gmra.mrb[0].mxu0 %v574
      %v613 = vpop.f32.mrb[0].mxu0
      %v614 = vadd.f32 0.0, %v613
      %v615 = vpop.f32.mrb[0].mxu0
      %v616 = vpop.f32.mrb[0].mxu0
      %v617 = vpop.f32.mrb[0].mxu0
      %618 = vdwg.mxu0
      %619 = vrot.lane.b32.xlu0 %v500, 112
      %v620 = vpop.permute.xlu0 %619
      %621 = vrot.lane.b32.xlu0 %v505, 112
      %v622 = vpop.permute.xlu0 %621
      %v624 = vsel %vm390, %v620, 0
      %v627 = vsel %vm390, %v622, 0
      %629 = vmatprep.subr.bf16.mxu0 0
      %630 = vmatpush1.bf16.xpose.msra.mxu0 %v627
      %631 = vmatprep.subr.bf16.mxu0 0
      %632 = vmatpush1.bf16.xpose.msra.mxu0 0
      %633 = vmatprep.subr.bf16.mxu0 0
      %634 = vmatpush1.bf16.xpose.msra.mxu0 0
      %635 = vmatprep.subr.bf16.mxu0 0
      %636 = vmatpush1.bf16.xpose.msra.mxu0 0
      %637 = vmatprep.subr.bf16.mxu0 0
      %638 = vmatpush1.bf16.xpose.msra.mxu0 0
      %639 = vmatprep.subr.bf16.mxu0 0
      %640 = vmatpush1.bf16.xpose.msra.mxu0 0
      %641 = vmatprep.subr.bf16.mxu0 0
      %642 = vmatpush1.bf16.xpose.msra.mxu0 0
      %643 = vmatprep.subr.bf16.mxu0 0
      %644 = vmatpush1.bf16.xpose.msra.mxu0 0
      %645 = vmatprep.subr.bf16.mxu0 0
      %646 = vmatpush1.bf16.xpose.msra.mxu0 0
      %647 = vmatprep.subr.bf16.mxu0 0
      %648 = vmatpush1.bf16.xpose.msra.mxu0 0
      %649 = vmatprep.subr.bf16.mxu0 0
      %650 = vmatpush1.bf16.xpose.msra.mxu0 0
      %651 = vmatprep.subr.bf16.mxu0 0
      %652 = vmatpush1.bf16.xpose.msra.mxu0 0
      %653 = vmatprep.subr.bf16.mxu0 0
      %654 = vmatpush1.bf16.xpose.msra.mxu0 0
      %655 = vmatprep.subr.bf16.mxu0 0
      %656 = vmatpush1.bf16.xpose.msra.mxu0 0
      %657 = vmatprep.subr.bf16.mxu0 0
      %658 = vmatpush1.bf16.xpose.msra.mxu0 0
      %659 = vmatprep.subr.bf16.mxu0 0
      %660 = vmatpush1.bf16.xpose.msra.mxu0 0
      %661 = vmatprep.mubr.bf16.mxu0 0
      %662 = vmatmul.mubr.bf16.gmra.mrb[0].mxu0 %v624
      %v663 = vpop.f32.mrb[0].mxu0
      %v664 = vadd.f32 0.0, %v663
      %v665 = vpop.f32.mrb[0].mxu0
      %v666 = vpop.f32.mrb[0].mxu0
      %v667 = vpop.f32.mrb[0].mxu0
      %668 = vdwg.mxu0
      %v669 = vmul.f32 %v664, 0.35355338
      %v670 = vsel %vm389, %v669, -1e+09
      %v671 = vsel %vm390, %v670, -inf
      %672 = vmax.xlane.f32.xlu0 %v671
      %v673 = vpop.xlane.xlu0 %672
      %v674 = vsub.f32 %v670, %v673
      %v675 = vmul.f32 %v674, 1.442695
      %v676 = vpow.pop %v675
      %v677 = vsel %vm390, %v676, 0.0
      %678 = vadd.xlane.f32.xlu0 %v677
      %v679 = vpop.xlane.xlu0 %678
      %v680 = vrcp.pop %v679
      %v681 = vmul.f32 %v676, %v680
      %v682 = vpack.c.bf16 %v681, %v681
      %683 = vrot.lane.b32.xlu0 %v570, 112
      %v684 = vpop.permute.xlu0 %683
      %v686 = vsel %vm390, %v682, 0
      %v689 = vsel %vm454, %v684, 0
      %691 = vmatprep.subr.bf16.mxu0 0
      %692 = vmatpush1.bf16.msra.mxu0 %v689
      %693 = vmatprep.subr.bf16.mxu0 0
      %694 = vmatpush1.bf16.msra.mxu0 0
      %695 = vmatprep.subr.bf16.mxu0 0
      %696 = vmatpush1.bf16.msra.mxu0 0
      %697 = vmatprep.subr.bf16.mxu0 0
      %698 = vmatpush1.bf16.msra.mxu0 0
      %699 = vmatprep.subr.bf16.mxu0 0
      %700 = vmatpush1.bf16.msra.mxu0 0
      %701 = vmatprep.subr.bf16.mxu0 0
      %702 = vmatpush1.bf16.msra.mxu0 0
      %703 = vmatprep.subr.bf16.mxu0 0
      %704 = vmatpush1.bf16.msra.mxu0 0
      %705 = vmatprep.subr.bf16.mxu0 0
      %706 = vmatpush1.bf16.msra.mxu0 0
      %707 = vmatprep.subr.bf16.mxu0 0
      %708 = vmatpush1.bf16.msra.mxu0 0
      %709 = vmatprep.subr.bf16.mxu0 0
      %710 = vmatpush1.bf16.msra.mxu0 0
      %711 = vmatprep.subr.bf16.mxu0 0
      %712 = vmatpush1.bf16.msra.mxu0 0
      %713 = vmatprep.subr.bf16.mxu0 0
      %714 = vmatpush1.bf16.msra.mxu0 0
      %715 = vmatprep.subr.bf16.mxu0 0
      %716 = vmatpush1.bf16.msra.mxu0 0
      %717 = vmatprep.subr.bf16.mxu0 0
      %718 = vmatpush1.bf16.msra.mxu0 0
      %719 = vmatprep.subr.bf16.mxu0 0
      %720 = vmatpush1.bf16.msra.mxu0 0
      %721 = vmatprep.subr.bf16.mxu0 0
      %722 = vmatpush1.bf16.msra.mxu0 0
      %723 = vmatprep.mubr.bf16.mxu0 0
      %724 = vmatmul.mubr.bf16.gmra.mrb[0].mxu0 %v686
      %v725 = vpop.f32.mrb[0].mxu0
      %v726 = vadd.f32 0.0, %v725
      %v727 = vpop.f32.mrb[0].mxu0
      %v728 = vpop.f32.mrb[0].mxu0
      %v729 = vpop.f32.mrb[0].mxu0
      %730 = vdwg.mxu0
      %731 = vrot.lane.b32.xlu0 %v500, 104
      %v732 = vpop.permute.xlu0 %731
      %733 = vrot.lane.b32.xlu0 %v505, 104
      %v734 = vpop.permute.xlu0 %733
      %v736 = vsel %vm390, %v732, 0
      %v739 = vsel %vm390, %v734, 0
      %741 = vmatprep.subr.bf16.mxu0 0
      %742 = vmatpush1.bf16.xpose.msra.mxu0 %v739
      %743 = vmatprep.subr.bf16.mxu0 0
      %744 = vmatpush1.bf16.xpose.msra.mxu0 0
      %745 = vmatprep.subr.bf16.mxu0 0
      %746 = vmatpush1.bf16.xpose.msra.mxu0 0
      %747 = vmatprep.subr.bf16.mxu0 0
      %748 = vmatpush1.bf16.xpose.msra.mxu0 0
      %749 = vmatprep.subr.bf16.mxu0 0
      %750 = vmatpush1.bf16.xpose.msra.mxu0 0
      %751 = vmatprep.subr.bf16.mxu0 0
      %752 = vmatpush1.bf16.xpose.msra.mxu0 0
      %753 = vmatprep.subr.bf16.mxu0 0
      %754 = vmatpush1.bf16.xpose.msra.mxu0 0
      %755 = vmatprep.subr.bf16.mxu0 0
      %756 = vmatpush1.bf16.xpose.msra.mxu0 0
      %757 = vmatprep.subr.bf16.mxu0 0
      %758 = vmatpush1.bf16.xpose.msra.mxu0 0
      %759 = vmatprep.subr.bf16.mxu0 0
      %760 = vmatpush1.bf16.xpose.msra.mxu0 0
      %761 = vmatprep.subr.bf16.mxu0 0
      %762 = vmatpush1.bf16.xpose.msra.mxu0 0
      %763 = vmatprep.subr.bf16.mxu0 0
      %764 = vmatpush1.bf16.xpose.msra.mxu0 0
      %765 = vmatprep.subr.bf16.mxu0 0
      %766 = vmatpush1.bf16.xpose.msra.mxu0 0
      %767 = vmatprep.subr.bf16.mxu0 0
      %768 = vmatpush1.bf16.xpose.msra.mxu0 0
      %769 = vmatprep.subr.bf16.mxu0 0
      %770 = vmatpush1.bf16.xpose.msra.mxu0 0
      %771 = vmatprep.subr.bf16.mxu0 0
      %772 = vmatpush1.bf16.xpose.msra.mxu0 0
      %773 = vmatprep.mubr.bf16.mxu0 0
      %774 = vmatmul.mubr.bf16.gmra.mrb[0].mxu0 %v736
      %v775 = vpop.f32.mrb[0].mxu0
      %v776 = vadd.f32 0.0, %v775
      %v777 = vpop.f32.mrb[0].mxu0
      %v778 = vpop.f32.mrb[0].mxu0
      %v779 = vpop.f32.mrb[0].mxu0
      %780 = vdwg.mxu0
      %v781 = vmul.f32 %v776, 0.35355338
      %v782 = vsel %vm389, %v781, -1e+09
      %v783 = vsel %vm390, %v782, -inf
      %784 = vmax.xlane.f32.xlu0 %v783
      %v785 = vpop.xlane.xlu0 %784
      %v786 = vsub.f32 %v782, %v785
      %v787 = vmul.f32 %v786, 1.442695
      %v788 = vpow.pop %v787
      %v789 = vsel %vm390, %v788, 0.0
      %790 = vadd.xlane.f32.xlu0 %v789
      %v791 = vpop.xlane.xlu0 %790
      %v792 = vrcp.pop %v791
      %v793 = vmul.f32 %v788, %v792
      %v794 = vpack.c.bf16 %v793, %v793
      %795 = vrot.lane.b32.xlu0 %v570, 104
      %v796 = vpop.permute.xlu0 %795
      %v798 = vsel %vm390, %v794, 0
      %v801 = vsel %vm454, %v796, 0
      %803 = vmatprep.subr.bf16.mxu0 0
      %804 = vmatpush1.bf16.msra.mxu0 %v801
      %805 = vmatprep.subr.bf16.mxu0 0
      %806 = vmatpush1.bf16.msra.mxu0 0
      %807 = vmatprep.subr.bf16.mxu0 0
      %808 = vmatpush1.bf16.msra.mxu0 0
      %809 = vmatprep.subr.bf16.mxu0 0
      %810 = vmatpush1.bf16.msra.mxu0 0
      %811 = vmatprep.subr.bf16.mxu0 0
      %812 = vmatpush1.bf16.msra.mxu0 0
      %813 = vmatprep.subr.bf16.mxu0 0
      %814 = vmatpush1.bf16.msra.mxu0 0
      %815 = vmatprep.subr.bf16.mxu0 0
      %816 = vmatpush1.bf16.msra.mxu0 0
      %817 = vmatprep.subr.bf16.mxu0 0
      %818 = vmatpush1.bf16.msra.mxu0 0
      %819 = vmatprep.subr.bf16.mxu0 0
      %820 = vmatpush1.bf16.msra.mxu0 0
      %821 = vmatprep.subr.bf16.mxu0 0
      %822 = vmatpush1.bf16.msra.mxu0 0
      %823 = vmatprep.subr.bf16.mxu0 0
      %824 = vmatpush1.bf16.msra.mxu0 0
      %825 = vmatprep.subr.bf16.mxu0 0
      %826 = vmatpush1.bf16.msra.mxu0 0
      %827 = vmatprep.subr.bf16.mxu0 0
      %828 = vmatpush1.bf16.msra.mxu0 0
      %829 = vmatprep.subr.bf16.mxu0 0
      %830 = vmatpush1.bf16.msra.mxu0 0
      %831 = vmatprep.subr.bf16.mxu0 0
      %832 = vmatpush1.bf16.msra.mxu0 0
      %833 = vmatprep.subr.bf16.mxu0 0
      %834 = vmatpush1.bf16.msra.mxu0 0
      %835 = vmatprep.mubr.bf16.mxu0 0
      %836 = vmatmul.mubr.bf16.gmra.mrb[0].mxu0 %v798
      %v837 = vpop.f32.mrb[0].mxu0
      %v838 = vadd.f32 0.0, %v837
      %v839 = vpop.f32.mrb[0].mxu0
      %v840 = vpop.f32.mrb[0].mxu0
      %v841 = vpop.f32.mrb[0].mxu0
      %842 = vdwg.mxu0
      %844 = vrot.lane.b32.xlu0 %v614, 8
      %v845 = vpop.permute.xlu0 %844
      %848 = vrot.lane.b32.xlu0 %v726, 16
      %v849 = vpop.permute.xlu0 %848
      %852 = vrot.lane.b32.xlu0 %v838, 24
      %v853 = vpop.permute.xlu0 %852
      %v855 = vsel %vm390, %v493, %v845
      %vm856 = vcmask 130048
      %v857 = vsel %vm856, %v855, %v849
      %vm858 = vcmask 195584
      %v859 = vsel %vm858, %v857, %v853
      %v860 = vld [vmem:[%s376] sm:$0xff]
      %v861 = vpack.c.bf16 %v859, %v859
      %v862 = vld [vmem:[%s4] sm:$0xf]
      %v863 = vld [vmem:[%s4 + $0x4] sm:$0xf]
      %v864 = vld [vmem:[%s4 + $0x8] sm:$0xf]
      %v865 = vld [vmem:[%s4 + $0xc] sm:$0xf]
      %v870 = vunpack.c.l.b16 %v862
      %v871 = vunpack.c.l.b16 %v863
      %v872 = vunpack.c.l.b16 %v864
      %v873 = vunpack.c.l.b16 %v865
      %v874 = vpack.c.b16 %v871, %v870
      %v875 = vpack.c.b16 %v873, %v872
      %vm878 = vcmask 261120
      %v880 = vsel %vm878, %v861, 0
      %882 = vmatprep.subr.bf16.mxu0 0
      %883 = vmatpush1.bf16.msra.mxu0 %v874
      %884 = vmatprep.subr.bf16.mxu0 0
      %885 = vmatpush1.bf16.msra.mxu0 %v875
      %886 = vmatprep.subr.bf16.mxu0 0
      %887 = vmatpush1.bf16.msra.mxu0 0
      %888 = vmatprep.subr.bf16.mxu0 0
      %889 = vmatpush1.bf16.msra.mxu0 0
      %890 = vmatprep.subr.bf16.mxu0 0
      %891 = vmatpush1.bf16.msra.mxu0 0
      %892 = vmatprep.subr.bf16.mxu0 0
      %893 = vmatpush1.bf16.msra.mxu0 0
      %894 = vmatprep.subr.bf16.mxu0 0
      %895 = vmatpush1.bf16.msra.mxu0 0
      %896 = vmatprep.subr.bf16.mxu0 0
      %897 = vmatpush1.bf16.msra.mxu0 0
      %898 = vmatprep.subr.bf16.mxu0 0
      %899 = vmatpush1.bf16.msra.mxu0 0
      %900 = vmatprep.subr.bf16.mxu0 0
      %901 = vmatpush1.bf16.msra.mxu0 0
      %902 = vmatprep.subr.bf16.mxu0 0
      %903 = vmatpush1.bf16.msra.mxu0 0
      %904 = vmatprep.subr.bf16.mxu0 0
      %905 = vmatpush1.bf16.msra.mxu0 0
      %906 = vmatprep.subr.bf16.mxu0 0
      %907 = vmatpush1.bf16.msra.mxu0 0
      %908 = vmatprep.subr.bf16.mxu0 0
      %909 = vmatpush1.bf16.msra.mxu0 0
      %910 = vmatprep.subr.bf16.mxu0 0
      %911 = vmatpush1.bf16.msra.mxu0 0
      %912 = vmatprep.subr.bf16.mxu0 0
      %913 = vmatpush1.bf16.msra.mxu0 0
      %914 = vmatprep.mubr.bf16.mxu0 0
      %915 = vmatmul.mubr.bf16.gmra.mrb[0].mxu0 %v880
      %v916 = vpop.f32.mrb[0].mxu0
      %v917 = vadd.f32 0.0, %v916
      %v918 = vpop.f32.mrb[0].mxu0
      %v919 = vpop.f32.mrb[0].mxu0
      %v920 = vpop.f32.mrb[0].mxu0
      %921 = vdwg.mxu0
      %v922 = vadd.f32 %v860, %v917
      %v923 = vld [vmem:[%s5] sm:$0x1]
      %v925 = vlaneseq
      %v926 = vshrl.u32 %v925, 7
      %v927 = vsub.s32 0, %v926
      %v928 = vrot.slane %v923, %v927
      %v930 = vadd.f32 %v922, %v928
      %931 = vst.msk [vmem:[%s383] sm:$0xff] %vm878, %v930
      %p932 = scmp.lt.s32.totalorder %s22, 1
      %s933 = scalar_select %p932, %s22, 1
      %p934 = scmp.lt.s32.totalorder %s23, 0
      %s935 = scalar_select %p934, %s23, 0
      %s936 = sadd.s32 %s935, %s933
      %s937 = smul.addr %s936, 8
      %s938 = scalar_lea.vmem %s7, %s937
      // Predicated region
      $region49: #{decoder_layer.7} parent=47 // pred_check
        %p939 = pneg %p226
      $region50: #{decoder_layer.7} parent=47 // pred_check_branch
        %941 = sbr.rel (%p939) target = $region52
      $region51: #{decoder_layer.7} parent=47 // pred_region
        _
      $region52: #{decoder_layer.7} parent=47 // pred_fallthru
        _
    $region48: #{decoder_layer.7} parent=5 // pred_fallthru
      _
    %p942 = scmp.le.s32.totalorder 2, %s13
    // Predicated region
    $region53: #{decoder_layer.7} parent=5 // pred_check
      %p943 = pneg %p942
    $region54: #{decoder_layer.7} parent=5 // pred_check_branch
      %945 = sbr.rel (%p943) target = $region56
    $region55: #{decoder_layer.7} parent=5 // pred_region
      %s946 = ssub.s32 %s13, 2
      // Predicated region
      $region57: #{decoder_layer.7} parent=55 // pred_check
        %p947 = pneg %p232
      $region58: #{decoder_layer.7} parent=55 // pred_check_branch
        %949 = sbr.rel (%p947) target = $region60
      $region59: #{decoder_layer.7} parent=55 // pred_region
        %p950 = scmp.lt.s32.totalorder %s24, 1
        %s951 = scalar_select %p950, %s24, 1
        %p952 = scmp.lt.s32.totalorder %s25, 0
        %s953 = scalar_select %p952, %s25, 0
        %s954 = sadd.s32 %s953, %s951
        %s955 = smul.addr %s954, 8
        %s956 = scalar_lea.vmem %s7, %s955
      $region60: #{decoder_layer.7} parent=55 // pred_fallthru
        _
    $region56: #{decoder_layer.7} parent=5 // pred_fallthru
      _
  $region6: #{decoder_layer.7} parent=0 // loop_footer
    %s17 = sadd.s32 1, %s13
  $region7: #{decoder_layer.7} parent=0 // loop_footer_branch
    %12 = sbr.rel target = $region3
  $region8: #{decoder_layer.7} parent=0 // loop_exit
    _

// kernel: decoder_layer.9
$region0: #{decoder_layer.9}
  #allocation0 [shape = 'u32[]', space=smem, size = 0x4, offset = 0x4, fixed_abs, tag = 'smem constant byte address 0x4 - core index']
  #allocation1 [shape = 'u32[144,128]{1,0:T(1,128)}', space=vmem, size = 0x12000, scoped, tag = 'internal scratch']
  %s0 = inlined_call_operand.vmem [shape: f32[16,32], index: 0, kind: input, shape index: {}]
  %s1 = inlined_call_operand.vmem [shape: bf16[32,64], index: 1, kind: input, shape index: {}]
  %s2 = inlined_call_operand.vmem [shape: f32[1,64], index: 2, kind: input, shape index: {}]
  %s3 = inlined_call_operand.vmem [shape: bf16[16,32], index: 3, kind: output, shape index: {0}]
  %s4 = inlined_call_operand.vmem [shape: bf16[16,32], index: 4, kind: output, shape index: {1}]
  %5 = xla_tuple %s3, %s4
  %s6 = sld [smem:[#allocation0]]
  $region30: #{decoder_layer.9} parent=0
    _
  %s8 = ssub.s32 1, %s6
  %s9 = scalar_select 0, %s8, %s6
  // Predicated region
  $region2: #{decoder_layer.9} parent=0 // pred_check
    _
  $region3: #{decoder_layer.9} parent=0 // pred_check_branch
    %11 = sbr.rel (0) target = $region5
  $region4: #{decoder_layer.9} parent=0 // pred_region
    _
  $region5: #{decoder_layer.9} parent=0 // pred_fallthru
    _
  // Predicated region
  $region6: #{decoder_layer.9} parent=0 // pred_check
    _
  $region7: #{decoder_layer.9} parent=0 // pred_check_branch
    %13 = sbr.rel (0) target = $region9
  $region8: #{decoder_layer.9} parent=0 // pred_region
    _
  $region9: #{decoder_layer.9} parent=0 // pred_fallthru
    _
  // Predicated region
  $region10: #{decoder_layer.9} parent=0 // pred_check
    _
  $region11: #{decoder_layer.9} parent=0 // pred_check_branch
    %15 = sbr.rel (0) target = $region13
  $region12: #{decoder_layer.9} parent=0 // pred_region
    _
  $region13: #{decoder_layer.9} parent=0 // pred_fallthru
    _
  %v17 = vld [vmem:[%s0] sm:$0xff]
  %v18 = vld [vmem:[%s0 + $0x8] sm:$0xff]
  %v19 = vpack.c.bf16 %v18, %v17
  %v20 = vld [vmem:[%s1] sm:$0xf]
  %v21 = vld [vmem:[%s1 + $0x4] sm:$0xf]
  %v22 = vld [vmem:[%s1 + $0x8] sm:$0xf]
  %v23 = vld [vmem:[%s1 + $0xc] sm:$0xf]
  %v24 = vld [vmem:[%s2] sm:$0x1]
  %v26 = vlaneseq
  %v27 = vshrl.u32 %v26, 7
  %v28 = vsub.s32 0, %v27
  %v29 = vrot.slane %v24, %v28
  %v35 = vunpack.c.l.b16 %v20
  %v36 = vunpack.c.l.b16 %v21
  %v37 = vunpack.c.l.b16 %v22
  %v38 = vunpack.c.l.b16 %v23
  %v39 = vpack.c.b16 %v36, %v35
  %v40 = vpack.c.b16 %v38, %v37
  %vm43 = vcmask 261120
  %v45 = vsel %vm43, %v19, 0
  %47 = vmatprep.subr.bf16.mxu0 0
  %48 = vmatpush1.bf16.msra.mxu0 %v39
  %49 = vmatprep.subr.bf16.mxu0 0
  %50 = vmatpush1.bf16.msra.mxu0 %v40
  %51 = vmatprep.subr.bf16.mxu0 0
  %52 = vmatpush1.bf16.msra.mxu0 0
  %53 = vmatprep.subr.bf16.mxu0 0
  %54 = vmatpush1.bf16.msra.mxu0 0
  %55 = vmatprep.subr.bf16.mxu0 0
  %56 = vmatpush1.bf16.msra.mxu0 0
  %57 = vmatprep.subr.bf16.mxu0 0
  %58 = vmatpush1.bf16.msra.mxu0 0
  %59 = vmatprep.subr.bf16.mxu0 0
  %60 = vmatpush1.bf16.msra.mxu0 0
  %61 = vmatprep.subr.bf16.mxu0 0
  %62 = vmatpush1.bf16.msra.mxu0 0
  %63 = vmatprep.subr.bf16.mxu0 0
  %64 = vmatpush1.bf16.msra.mxu0 0
  %65 = vmatprep.subr.bf16.mxu0 0
  %66 = vmatpush1.bf16.msra.mxu0 0
  %67 = vmatprep.subr.bf16.mxu0 0
  %68 = vmatpush1.bf16.msra.mxu0 0
  %69 = vmatprep.subr.bf16.mxu0 0
  %70 = vmatpush1.bf16.msra.mxu0 0
  %71 = vmatprep.subr.bf16.mxu0 0
  %72 = vmatpush1.bf16.msra.mxu0 0
  %73 = vmatprep.subr.bf16.mxu0 0
  %74 = vmatpush1.bf16.msra.mxu0 0
  %75 = vmatprep.subr.bf16.mxu0 0
  %76 = vmatpush1.bf16.msra.mxu0 0
  %77 = vmatprep.subr.bf16.mxu0 0
  %78 = vmatpush1.bf16.msra.mxu0 0
  %79 = vmatprep.mubr.bf16.mxu0 0
  %80 = vmatmul.mubr.bf16.gmra.mrb[0].mxu0 %v45
  %v81 = vpop.f32.mrb[0].mxu0
  %v82 = vadd.f32 %v29, %v81
  %v83 = vpop.f32.mrb[0].mxu0
  %v84 = vpop.f32.mrb[0].mxu0
  %v85 = vadd.f32 %v29, %v84
  %v86 = vpop.f32.mrb[0].mxu0
  %87 = vdwg.mxu0
  %v88 = vpack.c.bf16 %v85, %v82
  %v90 = vunpack.c.l.b16 %v88
  %v91 = vunpack.c.h.b16 %v88
  %v92 = vpack.c.b16 %v90, %v90
  %v93 = vpack.c.b16 %v91, %v91
  %vm96 = vcmask 257024
  %97 = vst.msk [vmem:[%s3] sm:$0xf] %vm96, %v92
  %98 = vst.msk [vmem:[%s3 + $0x4] sm:$0xf] %vm96, %v93
  %99 = vrot.lane.b32.xlu0 %v92, 96
  %v100 = vpop.permute.xlu0 %99
  %101 = vrot.lane.b32.xlu0 %v93, 96
  %v102 = vpop.permute.xlu0 %101
  %105 = vst.msk [vmem:[%s4] sm:$0xf] %vm96, %v100
  %106 = vst.msk [vmem:[%s4 + $0x4] sm:$0xf] %vm96, %v102
  // Predicated region
  $region14: #{decoder_layer.9} parent=0 // pred_check
    _
  $region15: #{decoder_layer.9} parent=0 // pred_check_branch
    %108 = sbr.rel (0) target = $region17
  $region16: #{decoder_layer.9} parent=0 // pred_region
    _
  $region17: #{decoder_layer.9} parent=0 // pred_fallthru
    _
  // Predicated region
  $region18: #{decoder_layer.9} parent=0 // pred_check
    _
  $region19: #{decoder_layer.9} parent=0 // pred_check_branch
    %110 = sbr.rel (0) target = $region21
  $region20: #{decoder_layer.9} parent=0 // pred_region
    _
  $region21: #{decoder_layer.9} parent=0 // pred_fallthru
    _
  // Predicated region
  $region22: #{decoder_layer.9} parent=0 // pred_check
    _
  $region23: #{decoder_layer.9} parent=0 // pred_check_branch
    %112 = sbr.rel (0) target = $region25
  $region24: #{decoder_layer.9} parent=0 // pred_region
    _
  $region25: #{decoder_layer.9} parent=0 // pred_fallthru
    _
  // Predicated region
  $region26: #{decoder_layer.9} parent=0 // pred_check
    _
  $region27: #{decoder_layer.9} parent=0 // pred_check_branch
    %114 = sbr.rel (0) target = $region29
  $region28: #{decoder_layer.9} parent=0 // pred_region
    _
  $region29: #{decoder_layer.9} parent=0 // pred_fallthru
    _

// kernel: decoder_layer.11
$region0: #{decoder_layer.11}
  #allocation0 [shape = 'u32[]', space=smem, size = 0x4, offset = 0x4, fixed_abs, tag = 'smem constant byte address 0x4 - core index']
  #allocation1 [shape = 'u32[144,128]{1,0:T(1,128)}', space=vmem, size = 0x12000, scoped, tag = 'internal scratch']
  %s0 = inlined_call_operand.vmem [shape: f32[16,32], index: 0, kind: input, shape index: {}, may-alias: {0,7}]
  %s1 = inlined_call_operand.vmem [shape: f32[1,32], index: 1, kind: input, shape index: {}]
  %s2 = inlined_call_operand.vmem [shape: f32[1,32], index: 2, kind: input, shape index: {}]
  %s3 = inlined_call_operand.vmem [shape: bf16[32,64], index: 3, kind: input, shape index: {}]
  %s4 = inlined_call_operand.vmem [shape: f32[1,64], index: 4, kind: input, shape index: {}]
  %s5 = inlined_call_operand.vmem [shape: bf16[64,32], index: 5, kind: input, shape index: {}]
  %s6 = inlined_call_operand.vmem [shape: f32[1,32], index: 6, kind: input, shape index: {}]
  %s7 = inlined_call_operand.vmem [shape: f32[16,32], index: 7, kind: output, shape index: {}, may-alias: {0,7}]
  %s8 = sld [smem:[#allocation0]]
  $region38: #{decoder_layer.11} parent=0
    _
  %s10 = ssub.s32 1, %s8
  %s11 = scalar_select 0, %s10, %s8
  // Predicated region
  $region2: #{decoder_layer.11} parent=0 // pred_check
    _
  $region3: #{decoder_layer.11} parent=0 // pred_check_branch
    %13 = sbr.rel (0) target = $region5
  $region4: #{decoder_layer.11} parent=0 // pred_region
    _
  $region5: #{decoder_layer.11} parent=0 // pred_fallthru
    _
  // Predicated region
  $region6: #{decoder_layer.11} parent=0 // pred_check
    _
  $region7: #{decoder_layer.11} parent=0 // pred_check_branch
    %15 = sbr.rel (0) target = $region9
  $region8: #{decoder_layer.11} parent=0 // pred_region
    _
  $region9: #{decoder_layer.11} parent=0 // pred_fallthru
    _
  // Predicated region
  $region10: #{decoder_layer.11} parent=0 // pred_check
    _
  $region11: #{decoder_layer.11} parent=0 // pred_check_branch
    %17 = sbr.rel (0) target = $region13
  $region12: #{decoder_layer.11} parent=0 // pred_region
    _
  $region13: #{decoder_layer.11} parent=0 // pred_fallthru
    _
  // Predicated region
  $region14: #{decoder_layer.11} parent=0 // pred_check
    _
  $region15: #{decoder_layer.11} parent=0 // pred_check_branch
    %19 = sbr.rel (0) target = $region17
  $region16: #{decoder_layer.11} parent=0 // pred_region
    _
  $region17: #{decoder_layer.11} parent=0 // pred_fallthru
    _
  // Predicated region
  $region18: #{decoder_layer.11} parent=0 // pred_check
    _
  $region19: #{decoder_layer.11} parent=0 // pred_check_branch
    %21 = sbr.rel (0) target = $region21
  $region20: #{decoder_layer.11} parent=0 // pred_region
    _
  $region21: #{decoder_layer.11} parent=0 // pred_fallthru
    _
  // Predicated region
  $region22: #{decoder_layer.11} parent=0 // pred_check
    _
  $region23: #{decoder_layer.11} parent=0 // pred_check_branch
    %23 = sbr.rel (0) target = $region25
  $region24: #{decoder_layer.11} parent=0 // pred_region
    _
  $region25: #{decoder_layer.11} parent=0 // pred_fallthru
    _
  // Predicated region
  $region26: #{decoder_layer.11} parent=0 // pred_check
    _
  $region27: #{decoder_layer.11} parent=0 // pred_check_branch
    %25 = sbr.rel (0) target = $region29
  $region28: #{decoder_layer.11} parent=0 // pred_region
    _
  $region29: #{decoder_layer.11} parent=0 // pred_fallthru
    _
  %v27 = vld [vmem:[%s0] sm:$0xff]
  %v28 = vld [vmem:[%s0 + $0x8] sm:$0xff]
  %v29 = vld [vmem:[%s1] sm:$0x1]
  %v30 = vld [vmem:[%s2] sm:$0x1]
  %vm31 = vcmask 261120
  %v32 = vsel %vm31, %v27, 0.0
  %33 = vadd.xlane.f32.xlu0 %v32
  %v34 = vpop.xlane.xlu0 %33
  %v35 = vsel %vm31, %v28, 0.0
  %36 = vadd.xlane.f32.xlu0 %v35
  %v37 = vpop.xlane.xlu0 %36
  %v38 = vrcp.pop 32.0
  %v39 = vmul.f32 %v34, %v38
  %v40 = vmul.f32 %v37, %v38
  %v41 = vsub.f32 %v27, %v39
  %v42 = vsub.f32 %v28, %v40
  %v43 = vmul.f32 %v41, %v41
  %v44 = vmul.f32 %v42, %v42
  %v45 = vsel %vm31, %v43, 0.0
  %46 = vadd.xlane.f32.xlu0 %v45
  %v47 = vpop.xlane.xlu0 %46
  %v48 = vsel %vm31, %v44, 0.0
  %49 = vadd.xlane.f32.xlu0 %v48
  %v50 = vpop.xlane.xlu0 %49
  %v51 = vrcp.pop 31.0
  %v52 = vmul.f32 %v47, %v51
  %v53 = vmul.f32 %v50, %v51
  %v55 = vlaneseq
  %v56 = vshrl.u32 %v55, 7
  %v57 = vsub.s32 0, %v56
  %v58 = vrot.slane %v29, %v57
  %v60 = vmul.f32 %v58, %v41
  %v61 = vmul.f32 %v58, %v42
  %v62 = vrsqrt.pop %v52
  %v63 = vmul.f32 %v52, %v62
  %vm64 = vcmp.eq.f32.partialorder %v52, inf
  %v65 = vsel %vm64, %v52, %v63
  %vm66 = vcmp.eq.f32.partialorder %v52, 0.0
  %v67 = vand.u32 %v52, 2147483648
  %v68 = vsel %vm66, %v67, %v65
  %v69 = vrsqrt.pop %v53
  %v70 = vmul.f32 %v53, %v69
  %vm71 = vcmp.eq.f32.partialorder %v53, inf
  %v72 = vsel %vm71, %v53, %v70
  %vm73 = vcmp.eq.f32.partialorder %v53, 0.0
  %v74 = vand.u32 %v53, 2147483648
  %v75 = vsel %vm73, %v74, %v72
  %v76 = vadd.f32 %v68, 1e-06
  %v77 = vadd.f32 %v75, 1e-06
  %v78 = vrcp.pop %v76
  %v79 = vmul.f32 %v60, %v78
  %v80 = vrcp.pop %v77
  %v81 = vmul.f32 %v61, %v80
  %v83 = vlaneseq
  %v84 = vshrl.u32 %v83, 7
  %v85 = vsub.s32 0, %v84
  %v86 = vrot.slane %v30, %v85
  %v88 = vadd.f32 %v79, %v86
  %v89 = vadd.f32 %v81, %v86
  %v90 = vpack.c.bf16 %v89, %v88
  %v91 = vld [vmem:[%s3] sm:$0xf]
  %v92 = vld [vmem:[%s3 + $0x4] sm:$0xf]
  %v93 = vld [vmem:[%s3 + $0x8] sm:$0xf]
  %v94 = vld [vmem:[%s3 + $0xc] sm:$0xf]
  %v95 = vld [vmem:[%s4] sm:$0x1]
  %v97 = vlaneseq
  %v98 = vshrl.u32 %v97, 7
  %v99 = vsub.s32 0, %v98
  %v100 = vrot.slane %v95, %v99
  %v106 = vunpack.c.l.b16 %v91
  %v107 = vunpack.c.l.b16 %v92
  %v108 = vunpack.c.l.b16 %v93
  %v109 = vunpack.c.l.b16 %v94
  %v110 = vpack.c.b16 %v107, %v106
  %v111 = vpack.c.b16 %v109, %v108
  %v115 = vsel %vm31, %v90, 0
  %117 = vmatprep.subr.bf16.mxu0 0
  %118 = vmatpush1.bf16.msra.mxu0 %v110
  %119 = vmatprep.subr.bf16.mxu0 0
  %120 = vmatpush1.bf16.msra.mxu0 %v111
  %121 = vmatprep.subr.bf16.mxu0 0
  %122 = vmatpush1.bf16.msra.mxu0 0
  %123 = vmatprep.subr.bf16.mxu0 0
  %124 = vmatpush1.bf16.msra.mxu0 0
  %125 = vmatprep.subr.bf16.mxu0 0
  %126 = vmatpush1.bf16.msra.mxu0 0
  %127 = vmatprep.subr.bf16.mxu0 0
  %128 = vmatpush1.bf16.msra.mxu0 0
  %129 = vmatprep.subr.bf16.mxu0 0
  %130 = vmatpush1.bf16.msra.mxu0 0
  %131 = vmatprep.subr.bf16.mxu0 0
  %132 = vmatpush1.bf16.msra.mxu0 0
  %133 = vmatprep.subr.bf16.mxu0 0
  %134 = vmatpush1.bf16.msra.mxu0 0
  %135 = vmatprep.subr.bf16.mxu0 0
  %136 = vmatpush1.bf16.msra.mxu0 0
  %137 = vmatprep.subr.bf16.mxu0 0
  %138 = vmatpush1.bf16.msra.mxu0 0
  %139 = vmatprep.subr.bf16.mxu0 0
  %140 = vmatpush1.bf16.msra.mxu0 0
  %141 = vmatprep.subr.bf16.mxu0 0
  %142 = vmatpush1.bf16.msra.mxu0 0
  %143 = vmatprep.subr.bf16.mxu0 0
  %144 = vmatpush1.bf16.msra.mxu0 0
  %145 = vmatprep.subr.bf16.mxu0 0
  %146 = vmatpush1.bf16.msra.mxu0 0
  %147 = vmatprep.subr.bf16.mxu0 0
  %148 = vmatpush1.bf16.msra.mxu0 0
  %149 = vmatprep.mubr.bf16.mxu0 0
  %150 = vmatmul.mubr.bf16.gmra.mrb[0].mxu0 %v115
  %v151 = vpop.f32.mrb[0].mxu0
  %v152 = vadd.f32 %v100, %v151
  %v153 = vpop.f32.mrb[0].mxu0
  %v154 = vpop.f32.mrb[0].mxu0
  %v155 = vadd.f32 %v100, %v154
  %v156 = vpop.f32.mrb[0].mxu0
  %157 = vdwg.mxu0
  %v158 = vmax.f32 %v152, 0.0
  %v159 = vmax.f32 %v155, 0.0
  %v160 = vpack.c.bf16 %v159, %v158
  %v161 = vld [vmem:[%s5] sm:$0xf]
  %v162 = vld [vmem:[%s5 + $0x4] sm:$0xf]
  %v163 = vld [vmem:[%s5 + $0x8] sm:$0xf]
  %v164 = vld [vmem:[%s5 + $0xc] sm:$0xf]
  %v165 = vld [vmem:[%s5 + $0x10] sm:$0xf]
  %v166 = vld [vmem:[%s5 + $0x14] sm:$0xf]
  %v167 = vld [vmem:[%s5 + $0x18] sm:$0xf]
  %v168 = vld [vmem:[%s5 + $0x1c] sm:$0xf]
  %v177 = vunpack.c.l.b16 %v161
  %v178 = vunpack.c.l.b16 %v162
  %v179 = vunpack.c.l.b16 %v163
  %v180 = vunpack.c.l.b16 %v164
  %v181 = vunpack.c.l.b16 %v165
  %v182 = vunpack.c.l.b16 %v166
  %v183 = vunpack.c.l.b16 %v167
  %v184 = vunpack.c.l.b16 %v168
  %v185 = vpack.c.b16 %v178, %v177
  %v186 = vpack.c.b16 %v180, %v179
  %v187 = vpack.c.b16 %v182, %v181
  %v188 = vpack.c.b16 %v184, %v183
  %vm193 = vcmask 523264
  %v195 = vsel %vm193, %v160, 0
  %197 = vmatprep.subr.bf16.mxu0 0
  %198 = vmatpush1.bf16.msra.mxu0 %v185
  %199 = vmatprep.subr.bf16.mxu0 0
  %200 = vmatpush1.bf16.msra.mxu0 %v186
  %201 = vmatprep.subr.bf16.mxu0 0
  %202 = vmatpush1.bf16.msra.mxu0 %v187
  %203 = vmatprep.subr.bf16.mxu0 0
  %204 = vmatpush1.bf16.msra.mxu0 %v188
  %205 = vmatprep.subr.bf16.mxu0 0
  %206 = vmatpush1.bf16.msra.mxu0 0
  %207 = vmatprep.subr.bf16.mxu0 0
  %208 = vmatpush1.bf16.msra.mxu0 0
  %209 = vmatprep.subr.bf16.mxu0 0
  %210 = vmatpush1.bf16.msra.mxu0 0
  %211 = vmatprep.subr.bf16.mxu0 0
  %212 = vmatpush1.bf16.msra.mxu0 0
  %213 = vmatprep.subr.bf16.mxu0 0
  %214 = vmatpush1.bf16.msra.mxu0 0
  %215 = vmatprep.subr.bf16.mxu0 0
  %216 = vmatpush1.bf16.msra.mxu0 0
  %217 = vmatprep.subr.bf16.mxu0 0
  %218 = vmatpush1.bf16.msra.mxu0 0
  %219 = vmatprep.subr.bf16.mxu0 0
  %220 = vmatpush1.bf16.msra.mxu0 0
  %221 = vmatprep.subr.bf16.mxu0 0
  %222 = vmatpush1.bf16.msra.mxu0 0
  %223 = vmatprep.subr.bf16.mxu0 0
  %224 = vmatpush1.bf16.msra.mxu0 0
  %225 = vmatprep.subr.bf16.mxu0 0
  %226 = vmatpush1.bf16.msra.mxu0 0
  %227 = vmatprep.subr.bf16.mxu0 0
  %228 = vmatpush1.bf16.msra.mxu0 0
  %229 = vmatprep.mubr.bf16.mxu0 0
  %230 = vmatmul.mubr.bf16.gmra.mrb[0].mxu0 %v195
  %v231 = vpop.f32.mrb[0].mxu0
  %v232 = vadd.f32 0.0, %v231
  %v233 = vpop.f32.mrb[0].mxu0
  %v234 = vpop.f32.mrb[0].mxu0
  %v235 = vadd.f32 0.0, %v234
  %v236 = vpop.f32.mrb[0].mxu0
  %237 = vdwg.mxu0
  %v238 = vadd.f32 %v27, %v232
  %v239 = vadd.f32 %v28, %v235
  %v240 = vld [vmem:[%s6] sm:$0x1]
  %v242 = vlaneseq
  %v243 = vshrl.u32 %v242, 7
  %v244 = vsub.s32 0, %v243
  %v245 = vrot.slane %v240, %v244
  %v247 = vadd.f32 %v238, %v245
  %v248 = vadd.f32 %v239, %v245
  %249 = vst.msk [vmem:[%s7] sm:$0xff] %vm31, %v247
  %250 = vst.msk [vmem:[%s7 + $0x8] sm:$0xff] %vm31, %v248
  // Predicated region
  $region30: #{decoder_layer.11} parent=0 // pred_check
    _
  $region31: #{decoder_layer.11} parent=0 // pred_check_branch
    %252 = sbr.rel (0) target = $region33
  $region32: #{decoder_layer.11} parent=0 // pred_region
    _
  $region33: #{decoder_layer.11} parent=0 // pred_fallthru
    _
  // Predicated region
  $region34: #{decoder_layer.11} parent=0 // pred_check
    _
  $region35: #{decoder_layer.11} parent=0 // pred_check_branch
    %254 = sbr.rel (0) target = $region37
  $region36: #{decoder_layer.11} parent=0 // pred_region
    _
  $region37: #{decoder_layer.11} parent=0 // pred_fallthru
    _

</llo_original>
